<compile_context>
chip_gen: v5e
topology: v5e:2x2
jax: 0.10.0
libtpu: 0.0.40
codegen_flags: <defaults>
</compile_context>

<pallas_src>
import jax
import jax.numpy as jnp
from jax.experimental import pallas as pl
from jax.experimental.pallas import tpu as pltpu

NEURONS = 50
N_HIDDEN = 7
D_IN = 4
D_OUT = 4
D_PAD = 128       # padded hidden width (lane dimension)
D_IO = 8          # padded input/output feature width (lane-lean I/O)
TM_MAX = 2048     # max batch rows per grid step (compute-bound; VMEM is ample)


# ---------------------------------------------------------------------------
# Pallas kernel: full MLP forward for one batch tile.
# bf16 MXU operands, f32 accumulation / bias / tanh, f32 output.
# ---------------------------------------------------------------------------
def mlp_kernel(x_ref, w_in_ref, b_in_ref, w_hid_ref, b_hid_ref,
               w_out_ref, b_out_ref, o_ref):
    # Input layer: (TM, 8)bf16 @ (8, 128)bf16 -> f32 acc, + b, tanh.
    h = jnp.dot(x_ref[...].astype(jnp.bfloat16), w_in_ref[...],
                preferred_element_type=jnp.float32) + b_in_ref[...]
    h = jnp.tanh(h).astype(jnp.bfloat16)
    # Hidden layers (static unroll, L = 7): (TM, 128)bf16 @ (128, 128)bf16.
    for l in range(N_HIDDEN):
        z = jnp.dot(h, w_hid_ref[l],
                    preferred_element_type=jnp.float32) + b_hid_ref[l]
        h = jnp.tanh(z).astype(jnp.bfloat16)
    # Output layer: (TM, 128)bf16 @ (128, 8)bf16 + b (no activation), f32 out.
    o_ref[...] = (jnp.dot(h, w_out_ref[...],
                          preferred_element_type=jnp.float32)
                  + b_out_ref[...]).astype(o_ref.dtype)


# ---------------------------------------------------------------------------
# One-time parameter padding to the TPU lane layout (reuse across calls).
# Weights stored transposed (fan_in, fan_out) in bf16; biases in f32.
# ---------------------------------------------------------------------------
def pad_params(params):
    w_in, b_in, w_hid, b_hid, w_out, b_out = params
    w_in_p = (jnp.zeros((D_IO, D_PAD), jnp.float32)
              .at[:D_IN, :NEURONS].set(w_in).astype(jnp.bfloat16))
    b_in_p = jnp.zeros((1, D_PAD), jnp.float32).at[0, :NEURONS].set(b_in)
    w_hid_p = (jnp.zeros((N_HIDDEN, D_PAD, D_PAD), jnp.float32)
               .at[:, :NEURONS, :NEURONS].set(w_hid).astype(jnp.bfloat16))
    b_hid_p = (jnp.zeros((N_HIDDEN, D_PAD), jnp.float32)
               .at[:, :NEURONS].set(b_hid))
    w_out_p = (jnp.zeros((D_PAD, D_IO), jnp.float32)
               .at[:NEURONS, :D_OUT].set(w_out).astype(jnp.bfloat16))
    b_out_p = jnp.zeros((1, D_IO), jnp.float32).at[0, :D_OUT].set(b_out)
    return (w_in_p, b_in_p, w_hid_p, b_hid_p, w_out_p, b_out_p)


def _round_up(v, m):
    return ((v + m - 1) // m) * m


# ---------------------------------------------------------------------------
# Wrapper: batch padding + pallas_call plumbing.
# ---------------------------------------------------------------------------
def vpnsfnets_forward(x, padded_params, tm=None):
    """x: (N, 4) float32 -> (N, 4) float32."""
    n = x.shape[0]
    if tm is None:
        # Single large tile when the batch fits (no pointless extra grid step
        # on 1-TC chips); otherwise TM_MAX-row tiles.  On v7x one could round
        # the step count to a multiple of 2 for the two TensorCores, but the
        # kernel is correct and near-optimal either way.
        tm = min(TM_MAX, _round_up(max(n, 8), 8))
    n_pad = pl.cdiv(n, tm) * tm

    w_in_p, b_in_p, w_hid_p, b_hid_p, w_out_p, b_out_p = padded_params

    # Lane-lean input: pad features 4 -> 8 and rows n -> n_pad with zeros.
    x_p = jnp.zeros((n_pad, D_IO), jnp.float32).at[:n, :D_IN].set(x)

    grid = (n_pad // tm,)

    flops = 2 * n_pad * (D_IO * D_PAD + N_HIDDEN * D_PAD * D_PAD + D_PAD * D_IO)
    transcendentals = (1 + N_HIDDEN) * n_pad * D_PAD
    weight_bytes = (2 * (w_in_p.size + w_hid_p.size + w_out_p.size)     # bf16
                    + 4 * (b_in_p.size + b_hid_p.size + b_out_p.size))  # f32
    bytes_accessed = 4 * (x_p.size + n_pad * D_IO) + weight_bytes

    out_p = pl.pallas_call(
        mlp_kernel,
        out_shape=jax.ShapeDtypeStruct((n_pad, D_IO), jnp.float32),
        grid_spec=pltpu.PrefetchScalarGridSpec(
            num_scalar_prefetch=0,
            grid=grid,
            in_specs=[
                pl.BlockSpec((tm, D_IO), lambda i: (i, 0)),             # x tile
                # Weights/biases: constant index_map -> DMA'd once, resident
                # in VMEM across the whole grid (~0.25 MB bf16 total).
                pl.BlockSpec((D_IO, D_PAD), lambda i: (0, 0)),          # w_in
                pl.BlockSpec((1, D_PAD), lambda i: (0, 0)),             # b_in
                pl.BlockSpec((N_HIDDEN, D_PAD, D_PAD),
                             lambda i: (0, 0, 0)),                      # w_hid
                pl.BlockSpec((N_HIDDEN, D_PAD), lambda i: (0, 0)),      # b_hid
                pl.BlockSpec((D_PAD, D_IO), lambda i: (0, 0)),          # w_out
                pl.BlockSpec((1, D_IO), lambda i: (0, 0)),              # b_out
            ],
            out_specs=pl.BlockSpec((tm, D_IO), lambda i: (i, 0)),
        ),
        compiler_params=pltpu.CompilerParams(
            dimension_semantics=("parallel",)),
        cost_estimate=pl.CostEstimate(
            flops=flops,
            transcendentals=transcendentals,
            bytes_accessed=bytes_accessed),
    )(x_p, w_in_p, b_in_p, w_hid_p, b_hid_p, w_out_p, b_out_p)

    return out_p[:n, :D_OUT]


# ---------------------------------------------------------------------------
# Deterministic parameter initialization (xavier-uniform weights, as in the
# PyTorch module; biases use the default uniform(-1/sqrt(fan_in), .) rule).
# ---------------------------------------------------------------------------
def init_params(key):
    def xavier(key, fan_in, fan_out):
        bound = jnp.sqrt(6.0 / (fan_in + fan_out))
        return jax.random.uniform(key, (fan_in, fan_out), jnp.float32,
                                  -bound, bound)

    def bias(key, fan_in, fan_out):
        bound = 1.0 / jnp.sqrt(fan_in)
        return jax.random.uniform(key, (fan_out,), jnp.float32, -bound, bound)

    keys = jax.random.split(key, 4 + 2 * N_HIDDEN)
    w_in = xavier(keys[0], D_IN, NEURONS)
    b_in = bias(keys[1], D_IN, NEURONS)
    w_hid = jnp.stack([xavier(keys[2 + 2 * i], NEURONS, NEURONS)
                       for i in range(N_HIDDEN)])
    b_hid = jnp.stack([bias(keys[3 + 2 * i], NEURONS, NEURONS)
                       for i in range(N_HIDDEN)])
    w_out = xavier(keys[2 + 2 * N_HIDDEN], NEURONS, D_OUT)
    b_out = bias(keys[3 + 2 * N_HIDDEN], NEURONS, D_OUT)
    return (w_in, b_in, w_hid, b_hid, w_out, b_out)


# Pure-JAX f32 reference (matches the PyTorch module exactly).
def reference_forward_f32(x, params):
    w_in, b_in, w_hid, b_hid, w_out, b_out = params
    h = jnp.tanh(x @ w_in + b_in)
    for l in range(N_HIDDEN):
        h = jnp.tanh(h @ w_hid[l] + b_hid[l])
    return h @ w_out + b_out


# Pure-JAX reference with the same bf16-operand / f32-accumulate recipe as
# the kernel (for a tight-tolerance correctness check).
def reference_forward_bf16(x, params):
    w_in, b_in, w_hid, b_hid, w_out, b_out = params

    def bdot(a, b):
        return jnp.dot(a.astype(jnp.bfloat16), b.astype(jnp.bfloat16),
                       preferred_element_type=jnp.float32)

    h = jnp.tanh(bdot(x, w_in) + b_in)
    for l in range(N_HIDDEN):
        h = jnp.tanh(bdot(h, w_hid[l]) + b_hid[l])
    return bdot(h, w_out) + b_out


if __name__ == "__main__":
    key = jax.random.PRNGKey(0)
    pkey, xkey = jax.random.split(key)
    params = init_params(pkey)
    padded_params = pad_params(params)   # pad/cast once, reuse every step

    n = 500  # ragged batch of (x, y, z, t) collocation points (tests padding)
    x = jax.random.normal(xkey, (n, D_IN), jnp.float32)

    out = vpnsfnets_forward(x, padded_params)
    out = jax.block_until_ready(out)
    assert out.shape == (n, D_OUT)

    # Tight check vs a JAX reference using the identical bf16-operand recipe.
    ref_bf16 = reference_forward_bf16(x, params)
    assert jnp.allclose(out, ref_bf16, atol=2e-3, rtol=2e-3), \
        "mismatch vs bf16-operand reference"

    # Sanity check vs the exact f32 PyTorch-equivalent forward (loose
    # tolerance: the only difference is bf16 rounding of MXU operands).
    ref_f32 = reference_forward_f32(x, params)
    assert jnp.allclose(out, ref_f32, atol=5e-2, rtol=5e-2), \
        "mismatch vs f32 reference"

    print("KERNEL_OK")
</pallas_src>

<mosaic_0001>
module attributes {stable_mosaic.version = 11 : i64} {
  func.func @mlp_kernel(%arg0: i32, %arg1: memref<504x8xf32, #tpu.memory_space<vmem>>, %arg2: memref<8x128xbf16, #tpu.memory_space<vmem>>, %arg3: memref<1x128xf32, #tpu.memory_space<vmem>>, %arg4: memref<7x128x128xbf16, #tpu.memory_space<vmem>>, %arg5: memref<7x128xf32, #tpu.memory_space<vmem>>, %arg6: memref<128x8xbf16, #tpu.memory_space<vmem>>, %arg7: memref<1x8xf32, #tpu.memory_space<vmem>>, %arg8: memref<504x8xf32, #tpu.memory_space<vmem>>) attributes {dimension_semantics = [#tpu.dimension_semantics<parallel>], iteration_bounds = array<i64: 1>, scalar_prefetch = 0 : i64, scratch_operands = 0 : i64, tpu.core_type = #tpu.core_type<tc>, window_params = [{transform_indices = @transform_0, window_bounds = array<i64: 504, 8>}, {pipeline_mode = #tpu.pipeline_mode<synchronous>, transform_indices = @transform_1, window_bounds = array<i64: 8, 128>}, {pipeline_mode = #tpu.pipeline_mode<synchronous>, transform_indices = @transform_2, window_bounds = array<i64: 1, 128>}, {pipeline_mode = #tpu.pipeline_mode<synchronous>, transform_indices = @transform_3, window_bounds = array<i64: 7, 128, 128>}, {pipeline_mode = #tpu.pipeline_mode<synchronous>, transform_indices = @transform_4, window_bounds = array<i64: 7, 128>}, {pipeline_mode = #tpu.pipeline_mode<synchronous>, transform_indices = @transform_5, window_bounds = array<i64: 128, 8>}, {pipeline_mode = #tpu.pipeline_mode<synchronous>, transform_indices = @transform_6, window_bounds = array<i64: 1, 8>}, {transform_indices = @transform_7, window_bounds = array<i64: 504, 8>}]} {
    %c0 = arith.constant 0 : index
    %c0_0 = arith.constant 0 : index
    %0 = vector.load %arg1[%c0, %c0_0] : memref<504x8xf32, #tpu.memory_space<vmem>>, vector<504x8xf32>
    %1 = arith.truncf %0 : vector<504x8xf32> to vector<504x8xbf16>
    %c0_1 = arith.constant 0 : index
    %c0_2 = arith.constant 0 : index
    %2 = vector.load %arg2[%c0_1, %c0_2] : memref<8x128xbf16, #tpu.memory_space<vmem>>, vector<8x128xbf16>
    %cst = arith.constant dense<0.000000e+00> : vector<504x128xf32>
    %3 = tpu.matmul %1, %2, %cst {dimension_numbers = #tpu.dot_dimension_numbers<[1], [0], [0], [1], [0, 0, 1, 1], [], []>} : vector<504x8xbf16>, vector<8x128xbf16>, vector<504x128xf32> -> vector<504x128xf32>
    %c0_3 = arith.constant 0 : index
    %c0_4 = arith.constant 0 : index
    %4 = vector.load %arg3[%c0_3, %c0_4] : memref<1x128xf32, #tpu.memory_space<vmem>>, vector<1x128xf32>
    %5 = vector.broadcast %4 : vector<1x128xf32> to vector<504x128xf32>
    %6 = arith.addf %3, %5 : vector<504x128xf32>
    %7 = math.tanh %6 : vector<504x128xf32>
    %8 = arith.truncf %7 : vector<504x128xf32> to vector<504x128xbf16>
    %c0_5 = arith.constant 0 : index
    %c0_6 = arith.constant 0 : index
    %c0_7 = arith.constant 0 : index
    %9 = vector.load %arg4[%c0_5, %c0_6, %c0_7] : memref<7x128x128xbf16, #tpu.memory_space<vmem>>, vector<1x128x128xbf16>
    %10 = vector.shape_cast %9 : vector<1x128x128xbf16> to vector<128x128xbf16>
    %cst_8 = arith.constant dense<0.000000e+00> : vector<504x128xf32>
    %11 = tpu.matmul %8, %10, %cst_8 {dimension_numbers = #tpu.dot_dimension_numbers<[1], [0], [0], [1], [0, 0, 1, 1], [], []>} : vector<504x128xbf16>, vector<128x128xbf16>, vector<504x128xf32> -> vector<504x128xf32>
    %c0_9 = arith.constant 0 : index
    %c0_10 = arith.constant 0 : index
    %12 = vector.load %arg5[%c0_9, %c0_10] : memref<7x128xf32, #tpu.memory_space<vmem>>, vector<1x128xf32>
    %13 = vector.shape_cast %12 : vector<1x128xf32> to vector<128xf32>
    %14 = vector.shape_cast %13 : vector<128xf32> to vector<1x128xf32>
    %15 = vector.broadcast %14 : vector<1x128xf32> to vector<504x128xf32>
    %16 = arith.addf %11, %15 : vector<504x128xf32>
    %17 = math.tanh %16 : vector<504x128xf32>
    %18 = arith.truncf %17 : vector<504x128xf32> to vector<504x128xbf16>
    %c1 = arith.constant 1 : index
    %c0_11 = arith.constant 0 : index
    %c0_12 = arith.constant 0 : index
    %19 = vector.load %arg4[%c1, %c0_11, %c0_12] : memref<7x128x128xbf16, #tpu.memory_space<vmem>>, vector<1x128x128xbf16>
    %20 = vector.shape_cast %19 : vector<1x128x128xbf16> to vector<128x128xbf16>
    %cst_13 = arith.constant dense<0.000000e+00> : vector<504x128xf32>
    %21 = tpu.matmul %18, %20, %cst_13 {dimension_numbers = #tpu.dot_dimension_numbers<[1], [0], [0], [1], [0, 0, 1, 1], [], []>} : vector<504x128xbf16>, vector<128x128xbf16>, vector<504x128xf32> -> vector<504x128xf32>
    %c1_14 = arith.constant 1 : index
    %c0_15 = arith.constant 0 : index
    %22 = vector.load %arg5[%c1_14, %c0_15] : memref<7x128xf32, #tpu.memory_space<vmem>>, vector<1x128xf32>
    %23 = vector.shape_cast %22 : vector<1x128xf32> to vector<128xf32>
    %24 = vector.shape_cast %23 : vector<128xf32> to vector<1x128xf32>
    %25 = vector.broadcast %24 : vector<1x128xf32> to vector<504x128xf32>
    %26 = arith.addf %21, %25 : vector<504x128xf32>
    %27 = math.tanh %26 : vector<504x128xf32>
    %28 = arith.truncf %27 : vector<504x128xf32> to vector<504x128xbf16>
    %c2 = arith.constant 2 : index
    %c0_16 = arith.constant 0 : index
    %c0_17 = arith.constant 0 : index
    %29 = vector.load %arg4[%c2, %c0_16, %c0_17] : memref<7x128x128xbf16, #tpu.memory_space<vmem>>, vector<1x128x128xbf16>
    %30 = vector.shape_cast %29 : vector<1x128x128xbf16> to vector<128x128xbf16>
    %cst_18 = arith.constant dense<0.000000e+00> : vector<504x128xf32>
    %31 = tpu.matmul %28, %30, %cst_18 {dimension_numbers = #tpu.dot_dimension_numbers<[1], [0], [0], [1], [0, 0, 1, 1], [], []>} : vector<504x128xbf16>, vector<128x128xbf16>, vector<504x128xf32> -> vector<504x128xf32>
    %c2_19 = arith.constant 2 : index
    %c0_20 = arith.constant 0 : index
    %32 = vector.load %arg5[%c2_19, %c0_20] : memref<7x128xf32, #tpu.memory_space<vmem>>, vector<1x128xf32>
    %33 = vector.shape_cast %32 : vector<1x128xf32> to vector<128xf32>
    %34 = vector.shape_cast %33 : vector<128xf32> to vector<1x128xf32>
    %35 = vector.broadcast %34 : vector<1x128xf32> to vector<504x128xf32>
    %36 = arith.addf %31, %35 : vector<504x128xf32>
    %37 = math.tanh %36 : vector<504x128xf32>
    %38 = arith.truncf %37 : vector<504x128xf32> to vector<504x128xbf16>
    %c3 = arith.constant 3 : index
    %c0_21 = arith.constant 0 : index
    %c0_22 = arith.constant 0 : index
    %39 = vector.load %arg4[%c3, %c0_21, %c0_22] : memref<7x128x128xbf16, #tpu.memory_space<vmem>>, vector<1x128x128xbf16>
    %40 = vector.shape_cast %39 : vector<1x128x128xbf16> to vector<128x128xbf16>
    %cst_23 = arith.constant dense<0.000000e+00> : vector<504x128xf32>
    %41 = tpu.matmul %38, %40, %cst_23 {dimension_numbers = #tpu.dot_dimension_numbers<[1], [0], [0], [1], [0, 0, 1, 1], [], []>} : vector<504x128xbf16>, vector<128x128xbf16>, vector<504x128xf32> -> vector<504x128xf32>
    %c3_24 = arith.constant 3 : index
    %c0_25 = arith.constant 0 : index
    %42 = vector.load %arg5[%c3_24, %c0_25] : memref<7x128xf32, #tpu.memory_space<vmem>>, vector<1x128xf32>
    %43 = vector.shape_cast %42 : vector<1x128xf32> to vector<128xf32>
    %44 = vector.shape_cast %43 : vector<128xf32> to vector<1x128xf32>
    %45 = vector.broadcast %44 : vector<1x128xf32> to vector<504x128xf32>
    %46 = arith.addf %41, %45 : vector<504x128xf32>
    %47 = math.tanh %46 : vector<504x128xf32>
    %48 = arith.truncf %47 : vector<504x128xf32> to vector<504x128xbf16>
    %c4 = arith.constant 4 : index
    %c0_26 = arith.constant 0 : index
    %c0_27 = arith.constant 0 : index
    %49 = vector.load %arg4[%c4, %c0_26, %c0_27] : memref<7x128x128xbf16, #tpu.memory_space<vmem>>, vector<1x128x128xbf16>
    %50 = vector.shape_cast %49 : vector<1x128x128xbf16> to vector<128x128xbf16>
    %cst_28 = arith.constant dense<0.000000e+00> : vector<504x128xf32>
    %51 = tpu.matmul %48, %50, %cst_28 {dimension_numbers = #tpu.dot_dimension_numbers<[1], [0], [0], [1], [0, 0, 1, 1], [], []>} : vector<504x128xbf16>, vector<128x128xbf16>, vector<504x128xf32> -> vector<504x128xf32>
    %c4_29 = arith.constant 4 : index
    %c0_30 = arith.constant 0 : index
    %52 = vector.load %arg5[%c4_29, %c0_30] : memref<7x128xf32, #tpu.memory_space<vmem>>, vector<1x128xf32>
    %53 = vector.shape_cast %52 : vector<1x128xf32> to vector<128xf32>
    %54 = vector.shape_cast %53 : vector<128xf32> to vector<1x128xf32>
    %55 = vector.broadcast %54 : vector<1x128xf32> to vector<504x128xf32>
    %56 = arith.addf %51, %55 : vector<504x128xf32>
    %57 = math.tanh %56 : vector<504x128xf32>
    %58 = arith.truncf %57 : vector<504x128xf32> to vector<504x128xbf16>
    %c5 = arith.constant 5 : index
    %c0_31 = arith.constant 0 : index
    %c0_32 = arith.constant 0 : index
    %59 = vector.load %arg4[%c5, %c0_31, %c0_32] : memref<7x128x128xbf16, #tpu.memory_space<vmem>>, vector<1x128x128xbf16>
    %60 = vector.shape_cast %59 : vector<1x128x128xbf16> to vector<128x128xbf16>
    %cst_33 = arith.constant dense<0.000000e+00> : vector<504x128xf32>
    %61 = tpu.matmul %58, %60, %cst_33 {dimension_numbers = #tpu.dot_dimension_numbers<[1], [0], [0], [1], [0, 0, 1, 1], [], []>} : vector<504x128xbf16>, vector<128x128xbf16>, vector<504x128xf32> -> vector<504x128xf32>
    %c5_34 = arith.constant 5 : index
    %c0_35 = arith.constant 0 : index
    %62 = vector.load %arg5[%c5_34, %c0_35] : memref<7x128xf32, #tpu.memory_space<vmem>>, vector<1x128xf32>
    %63 = vector.shape_cast %62 : vector<1x128xf32> to vector<128xf32>
    %64 = vector.shape_cast %63 : vector<128xf32> to vector<1x128xf32>
    %65 = vector.broadcast %64 : vector<1x128xf32> to vector<504x128xf32>
    %66 = arith.addf %61, %65 : vector<504x128xf32>
    %67 = math.tanh %66 : vector<504x128xf32>
    %68 = arith.truncf %67 : vector<504x128xf32> to vector<504x128xbf16>
    %c6 = arith.constant 6 : index
    %c0_36 = arith.constant 0 : index
    %c0_37 = arith.constant 0 : index
    %69 = vector.load %arg4[%c6, %c0_36, %c0_37] : memref<7x128x128xbf16, #tpu.memory_space<vmem>>, vector<1x128x128xbf16>
    %70 = vector.shape_cast %69 : vector<1x128x128xbf16> to vector<128x128xbf16>
    %cst_38 = arith.constant dense<0.000000e+00> : vector<504x128xf32>
    %71 = tpu.matmul %68, %70, %cst_38 {dimension_numbers = #tpu.dot_dimension_numbers<[1], [0], [0], [1], [0, 0, 1, 1], [], []>} : vector<504x128xbf16>, vector<128x128xbf16>, vector<504x128xf32> -> vector<504x128xf32>
    %c6_39 = arith.constant 6 : index
    %c0_40 = arith.constant 0 : index
    %72 = vector.load %arg5[%c6_39, %c0_40] : memref<7x128xf32, #tpu.memory_space<vmem>>, vector<1x128xf32>
    %73 = vector.shape_cast %72 : vector<1x128xf32> to vector<128xf32>
    %74 = vector.shape_cast %73 : vector<128xf32> to vector<1x128xf32>
    %75 = vector.broadcast %74 : vector<1x128xf32> to vector<504x128xf32>
    %76 = arith.addf %71, %75 : vector<504x128xf32>
    %77 = math.tanh %76 : vector<504x128xf32>
    %78 = arith.truncf %77 : vector<504x128xf32> to vector<504x128xbf16>
    %c0_41 = arith.constant 0 : index
    %c0_42 = arith.constant 0 : index
    %79 = vector.load %arg6[%c0_41, %c0_42] : memref<128x8xbf16, #tpu.memory_space<vmem>>, vector<128x8xbf16>
    %cst_43 = arith.constant dense<0.000000e+00> : vector<504x8xf32>
    %80 = tpu.matmul %78, %79, %cst_43 {dimension_numbers = #tpu.dot_dimension_numbers<[1], [0], [0], [1], [0, 0, 1, 1], [], []>} : vector<504x128xbf16>, vector<128x8xbf16>, vector<504x8xf32> -> vector<504x8xf32>
    %c0_44 = arith.constant 0 : index
    %c0_45 = arith.constant 0 : index
    %81 = vector.load %arg7[%c0_44, %c0_45] : memref<1x8xf32, #tpu.memory_space<vmem>>, vector<1x8xf32>
    %82 = vector.broadcast %81 : vector<1x8xf32> to vector<504x8xf32>
    %83 = arith.addf %80, %82 : vector<504x8xf32>
    %c0_46 = arith.constant 0 : index
    %c0_47 = arith.constant 0 : index
    %84 = vector.load %arg8[%c0_46, %c0_47] : memref<504x8xf32, #tpu.memory_space<vmem>>, vector<504x8xf32>
    tpu.vector_store %arg8[%c0_46, %c0_47], %83 {strides = array<i32>} : memref<504x8xf32, #tpu.memory_space<vmem>>, vector<504x8xf32>,
    return
  }
  func.func @transform_0(%arg0: i32) -> (i32, i32) {
    %c0_i32 = arith.constant 0 : i32
    %c0_i32_0 = arith.constant 0 : i32
    return %arg0, %c0_i32 : i32, i32
  }
  func.func @transform_1(%arg0: i32) -> (i32, i32) {
    %c0_i32 = arith.constant 0 : i32
    %c0_i32_0 = arith.constant 0 : i32
    %c0_i32_1 = arith.constant 0 : i32
    return %c0_i32, %c0_i32_0 : i32, i32
  }
  func.func @transform_2(%arg0: i32) -> (i32, i32) {
    %c0_i32 = arith.constant 0 : i32
    %c0_i32_0 = arith.constant 0 : i32
    %c0_i32_1 = arith.constant 0 : i32
    return %c0_i32, %c0_i32_0 : i32, i32
  }
  func.func @transform_3(%arg0: i32) -> (i32, i32, i32) {
    %c0_i32 = arith.constant 0 : i32
    %c0_i32_0 = arith.constant 0 : i32
    %c0_i32_1 = arith.constant 0 : i32
    %c0_i32_2 = arith.constant 0 : i32
    return %c0_i32, %c0_i32_0, %c0_i32_1 : i32, i32, i32
  }
  func.func @transform_4(%arg0: i32) -> (i32, i32) {
    %c0_i32 = arith.constant 0 : i32
    %c0_i32_0 = arith.constant 0 : i32
    %c0_i32_1 = arith.constant 0 : i32
    return %c0_i32, %c0_i32_0 : i32, i32
  }
  func.func @transform_5(%arg0: i32) -> (i32, i32) {
    %c0_i32 = arith.constant 0 : i32
    %c0_i32_0 = arith.constant 0 : i32
    %c0_i32_1 = arith.constant 0 : i32
    return %c0_i32, %c0_i32_0 : i32, i32
  }
  func.func @transform_6(%arg0: i32) -> (i32, i32) {
    %c0_i32 = arith.constant 0 : i32
    %c0_i32_0 = arith.constant 0 : i32
    %c0_i32_1 = arith.constant 0 : i32
    return %c0_i32, %c0_i32_0 : i32, i32
  }
  func.func @transform_7(%arg0: i32) -> (i32, i32) {
    %c0_i32 = arith.constant 0 : i32
    %c0_i32_0 = arith.constant 0 : i32
    return %arg0, %c0_i32 : i32, i32
  }
}

</mosaic_0001>

<llo_original>
// kernel: tpu_custom_call.1
$region0: #{tpu_custom_call.1}
  #allocation0 [shape = 'u32[]', space=smem, size = 0x4, offset = 0x4, fixed_abs, tag = 'smem constant byte address 0x4 - core index']
  #allocation1 [shape = 'u32[72,128]{1,0:T(1,128)}', space=vmem, size = 0x9000, scoped, tag = 'internal scratch']
  %s0 = inlined_call_operand.vmem [shape: f32[504,8], index: 0, kind: input, shape index: {}]
  %s1 = inlined_call_operand.vmem [shape: bf16[8,128], index: 1, kind: input, shape index: {}]
  %s2 = inlined_call_operand.vmem [shape: f32[1,128], index: 2, kind: input, shape index: {}]
  %s3 = inlined_call_operand.vmem [shape: bf16[7,128,128], index: 3, kind: input, shape index: {}]
  %s4 = inlined_call_operand.vmem [shape: f32[7,128], index: 4, kind: input, shape index: {}]
  %s5 = inlined_call_operand.vmem [shape: bf16[128,8], index: 5, kind: input, shape index: {}]
  %s6 = inlined_call_operand.vmem [shape: f32[1,8], index: 6, kind: input, shape index: {}]
  %s7 = inlined_call_operand.vmem [shape: f32[504,8], index: 7, kind: output, shape index: {}]
  %s8 = sld [smem:[#allocation0]]
  $region38: #{tpu_custom_call.1} parent=0
    _
  %s10 = ssub.s32 1, %s8
  %s11 = scalar_select 0, %s10, %s8
  // Predicated region
  $region2: #{tpu_custom_call.1} parent=0 // pred_check
    _
  $region3: #{tpu_custom_call.1} parent=0 // pred_check_branch
    %13 = sbr.rel (0) target = $region5
  $region4: #{tpu_custom_call.1} parent=0 // pred_region
    _
  $region5: #{tpu_custom_call.1} parent=0 // pred_fallthru
    _
  // Predicated region
  $region6: #{tpu_custom_call.1} parent=0 // pred_check
    _
  $region7: #{tpu_custom_call.1} parent=0 // pred_check_branch
    %15 = sbr.rel (0) target = $region9
  $region8: #{tpu_custom_call.1} parent=0 // pred_region
    _
  $region9: #{tpu_custom_call.1} parent=0 // pred_fallthru
    _
  // Predicated region
  $region10: #{tpu_custom_call.1} parent=0 // pred_check
    _
  $region11: #{tpu_custom_call.1} parent=0 // pred_check_branch
    %17 = sbr.rel (0) target = $region13
  $region12: #{tpu_custom_call.1} parent=0 // pred_region
    _
  $region13: #{tpu_custom_call.1} parent=0 // pred_fallthru
    _
  // Predicated region
  $region14: #{tpu_custom_call.1} parent=0 // pred_check
    _
  $region15: #{tpu_custom_call.1} parent=0 // pred_check_branch
    %19 = sbr.rel (0) target = $region17
  $region16: #{tpu_custom_call.1} parent=0 // pred_region
    _
  $region17: #{tpu_custom_call.1} parent=0 // pred_fallthru
    _
  // Predicated region
  $region18: #{tpu_custom_call.1} parent=0 // pred_check
    _
  $region19: #{tpu_custom_call.1} parent=0 // pred_check_branch
    %21 = sbr.rel (0) target = $region21
  $region20: #{tpu_custom_call.1} parent=0 // pred_region
    _
  $region21: #{tpu_custom_call.1} parent=0 // pred_fallthru
    _
  // Predicated region
  $region22: #{tpu_custom_call.1} parent=0 // pred_check
    _
  $region23: #{tpu_custom_call.1} parent=0 // pred_check_branch
    %23 = sbr.rel (0) target = $region25
  $region24: #{tpu_custom_call.1} parent=0 // pred_region
    _
  $region25: #{tpu_custom_call.1} parent=0 // pred_fallthru
    _
  // Predicated region
  $region26: #{tpu_custom_call.1} parent=0 // pred_check
    _
  $region27: #{tpu_custom_call.1} parent=0 // pred_check_branch
    %25 = sbr.rel (0) target = $region29
  $region28: #{tpu_custom_call.1} parent=0 // pred_region
    _
  $region29: #{tpu_custom_call.1} parent=0 // pred_fallthru
    _
  %v27 = vld [vmem:[%s0] sm:$0xff]
  %v28 = vld [vmem:[%s0 + $0x8] sm:$0xff]
  %v29 = vld [vmem:[%s0 + $0x10] sm:$0xff]
  %v30 = vld [vmem:[%s0 + $0x18] sm:$0xff]
  %v31 = vld [vmem:[%s0 + $0x20] sm:$0xff]
  %v32 = vld [vmem:[%s0 + $0x28] sm:$0xff]
  %v33 = vld [vmem:[%s0 + $0x30] sm:$0xff]
  %v34 = vld [vmem:[%s0 + $0x38] sm:$0xff]
  %v35 = vld [vmem:[%s0 + $0x40] sm:$0xff]
  %v36 = vld [vmem:[%s0 + $0x48] sm:$0xff]
  %v37 = vld [vmem:[%s0 + $0x50] sm:$0xff]
  %v38 = vld [vmem:[%s0 + $0x58] sm:$0xff]
  %v39 = vld [vmem:[%s0 + $0x60] sm:$0xff]
  %v40 = vld [vmem:[%s0 + $0x68] sm:$0xff]
  %v41 = vld [vmem:[%s0 + $0x70] sm:$0xff]
  %v42 = vld [vmem:[%s0 + $0x78] sm:$0xff]
  %v43 = vld [vmem:[%s0 + $0x80] sm:$0xff]
  %v44 = vld [vmem:[%s0 + $0x88] sm:$0xff]
  %v45 = vld [vmem:[%s0 + $0x90] sm:$0xff]
  %v46 = vld [vmem:[%s0 + $0x98] sm:$0xff]
  %v47 = vld [vmem:[%s0 + $0xa0] sm:$0xff]
  %v48 = vld [vmem:[%s0 + $0xa8] sm:$0xff]
  %v49 = vld [vmem:[%s0 + $0xb0] sm:$0xff]
  %v50 = vld [vmem:[%s0 + $0xb8] sm:$0xff]
  %v51 = vld [vmem:[%s0 + $0xc0] sm:$0xff]
  %v52 = vld [vmem:[%s0 + $0xc8] sm:$0xff]
  %v53 = vld [vmem:[%s0 + $0xd0] sm:$0xff]
  %v54 = vld [vmem:[%s0 + $0xd8] sm:$0xff]
  %v55 = vld [vmem:[%s0 + $0xe0] sm:$0xff]
  %v56 = vld [vmem:[%s0 + $0xe8] sm:$0xff]
  %v57 = vld [vmem:[%s0 + $0xf0] sm:$0xff]
  %v58 = vld [vmem:[%s0 + $0xf8] sm:$0xff]
  %v59 = vld [vmem:[%s0 + $0x100] sm:$0xff]
  %v60 = vld [vmem:[%s0 + $0x108] sm:$0xff]
  %v61 = vld [vmem:[%s0 + $0x110] sm:$0xff]
  %v62 = vld [vmem:[%s0 + $0x118] sm:$0xff]
  %v63 = vld [vmem:[%s0 + $0x120] sm:$0xff]
  %v64 = vld [vmem:[%s0 + $0x128] sm:$0xff]
  %v65 = vld [vmem:[%s0 + $0x130] sm:$0xff]
  %v66 = vld [vmem:[%s0 + $0x138] sm:$0xff]
  %v67 = vld [vmem:[%s0 + $0x140] sm:$0xff]
  %v68 = vld [vmem:[%s0 + $0x148] sm:$0xff]
  %v69 = vld [vmem:[%s0 + $0x150] sm:$0xff]
  %v70 = vld [vmem:[%s0 + $0x158] sm:$0xff]
  %v71 = vld [vmem:[%s0 + $0x160] sm:$0xff]
  %v72 = vld [vmem:[%s0 + $0x168] sm:$0xff]
  %v73 = vld [vmem:[%s0 + $0x170] sm:$0xff]
  %v74 = vld [vmem:[%s0 + $0x178] sm:$0xff]
  %v75 = vld [vmem:[%s0 + $0x180] sm:$0xff]
  %v76 = vld [vmem:[%s0 + $0x188] sm:$0xff]
  %v77 = vld [vmem:[%s0 + $0x190] sm:$0xff]
  %v78 = vld [vmem:[%s0 + $0x198] sm:$0xff]
  %v79 = vld [vmem:[%s0 + $0x1a0] sm:$0xff]
  %v80 = vld [vmem:[%s0 + $0x1a8] sm:$0xff]
  %v81 = vld [vmem:[%s0 + $0x1b0] sm:$0xff]
  %v82 = vld [vmem:[%s0 + $0x1b8] sm:$0xff]
  %v83 = vld [vmem:[%s0 + $0x1c0] sm:$0xff]
  %v84 = vld [vmem:[%s0 + $0x1c8] sm:$0xff]
  %v85 = vld [vmem:[%s0 + $0x1d0] sm:$0xff]
  %v86 = vld [vmem:[%s0 + $0x1d8] sm:$0xff]
  %v87 = vld [vmem:[%s0 + $0x1e0] sm:$0xff]
  %v88 = vld [vmem:[%s0 + $0x1e8] sm:$0xff]
  %v89 = vld [vmem:[%s0 + $0x1f0] sm:$0xff]
  %v90 = vpack.c.bf16 %v28, %v27
  %v91 = vpack.c.bf16 %v30, %v29
  %v92 = vpack.c.bf16 %v32, %v31
  %v93 = vpack.c.bf16 %v34, %v33
  %v94 = vpack.c.bf16 %v36, %v35
  %v95 = vpack.c.bf16 %v38, %v37
  %v96 = vpack.c.bf16 %v40, %v39
  %v97 = vpack.c.bf16 %v42, %v41
  %v98 = vpack.c.bf16 %v44, %v43
  %v99 = vpack.c.bf16 %v46, %v45
  %v100 = vpack.c.bf16 %v48, %v47
  %v101 = vpack.c.bf16 %v50, %v49
  %v102 = vpack.c.bf16 %v52, %v51
  %v103 = vpack.c.bf16 %v54, %v53
  %v104 = vpack.c.bf16 %v56, %v55
  %v105 = vpack.c.bf16 %v58, %v57
  %v106 = vpack.c.bf16 %v60, %v59
  %v107 = vpack.c.bf16 %v62, %v61
  %v108 = vpack.c.bf16 %v64, %v63
  %v109 = vpack.c.bf16 %v66, %v65
  %v110 = vpack.c.bf16 %v68, %v67
  %v111 = vpack.c.bf16 %v70, %v69
  %v112 = vpack.c.bf16 %v72, %v71
  %v113 = vpack.c.bf16 %v74, %v73
  %v114 = vpack.c.bf16 %v76, %v75
  %v115 = vpack.c.bf16 %v78, %v77
  %v116 = vpack.c.bf16 %v80, %v79
  %v117 = vpack.c.bf16 %v82, %v81
  %v118 = vpack.c.bf16 %v84, %v83
  %v119 = vpack.c.bf16 %v86, %v85
  %v120 = vpack.c.bf16 %v88, %v87
  %v121 = vpack.c.bf16 %v89, %v89
  %v122 = vld [vmem:[%s1] sm:$0xf]
  %v123 = vld [vmem:[%s2] sm:$0x1]
  %v125 = vperm.slane %v123, 0
  %vm127 = vcmask 64512
  %v129 = vsel %vm127, %v90, 0
  %v132 = vsel %vm127, %v91, 0
  %v135 = vsel %vm127, %v92, 0
  %v138 = vsel %vm127, %v93, 0
  %v141 = vsel %vm127, %v94, 0
  %v144 = vsel %vm127, %v95, 0
  %v147 = vsel %vm127, %v96, 0
  %v150 = vsel %vm127, %v97, 0
  %v153 = vsel %vm127, %v98, 0
  %v156 = vsel %vm127, %v99, 0
  %v159 = vsel %vm127, %v100, 0
  %v162 = vsel %vm127, %v101, 0
  %v165 = vsel %vm127, %v102, 0
  %v168 = vsel %vm127, %v103, 0
  %v171 = vsel %vm127, %v104, 0
  %v174 = vsel %vm127, %v105, 0
  %v177 = vsel %vm127, %v106, 0
  %v180 = vsel %vm127, %v107, 0
  %v183 = vsel %vm127, %v108, 0
  %v186 = vsel %vm127, %v109, 0
  %v189 = vsel %vm127, %v110, 0
  %v192 = vsel %vm127, %v111, 0
  %v195 = vsel %vm127, %v112, 0
  %v198 = vsel %vm127, %v113, 0
  %v201 = vsel %vm127, %v114, 0
  %v204 = vsel %vm127, %v115, 0
  %v207 = vsel %vm127, %v116, 0
  %v210 = vsel %vm127, %v117, 0
  %v213 = vsel %vm127, %v118, 0
  %v216 = vsel %vm127, %v119, 0
  %v219 = vsel %vm127, %v120, 0
  %v222 = vsel %vm127, %v121, 0
  %vm224 = vcmask 1043456
  %v226 = vsel %vm224, %v122, 0
  %228 = vmatpush.bf16.msra.mxu0 0
  %229 = vmatpush.bf16.msra.mxu0 0
  %230 = vmatpush.bf16.msra.mxu0 0
  %231 = vmatpush.bf16.msra.mxu0 0
  %232 = vmatpush.bf16.msra.mxu0 0
  %233 = vmatpush.bf16.msra.mxu0 0
  %234 = vmatpush.bf16.msra.mxu0 0
  %235 = vmatpush.bf16.msra.mxu0 %v226
  %236 = vmatmul.bf16.gmra.mxu0 %v129
  %v237 = vpop.f32.mrf.mxu0
  %v238 = vadd.f32 %v125, %v237
  %v239 = vpop.f32.mrf.mxu0
  %v240 = vadd.f32 %v125, %v239
  %241 = vmatmul.bf16.gmra.mxu0 %v132
  %v242 = vpop.f32.mrf.mxu0
  %v243 = vadd.f32 %v125, %v242
  %v244 = vpop.f32.mrf.mxu0
  %v245 = vadd.f32 %v125, %v244
  %246 = vmatmul.bf16.gmra.mxu0 %v135
  %v247 = vpop.f32.mrf.mxu0
  %v248 = vadd.f32 %v125, %v247
  %v249 = vpop.f32.mrf.mxu0
  %v250 = vadd.f32 %v125, %v249
  %251 = vmatmul.bf16.gmra.mxu0 %v138
  %v252 = vpop.f32.mrf.mxu0
  %v253 = vadd.f32 %v125, %v252
  %v254 = vpop.f32.mrf.mxu0
  %v255 = vadd.f32 %v125, %v254
  %256 = vmatmul.bf16.gmra.mxu0 %v141
  %v257 = vpop.f32.mrf.mxu0
  %v258 = vadd.f32 %v125, %v257
  %v259 = vpop.f32.mrf.mxu0
  %v260 = vadd.f32 %v125, %v259
  %261 = vmatmul.bf16.gmra.mxu0 %v144
  %v262 = vpop.f32.mrf.mxu0
  %v263 = vadd.f32 %v125, %v262
  %v264 = vpop.f32.mrf.mxu0
  %v265 = vadd.f32 %v125, %v264
  %266 = vmatmul.bf16.gmra.mxu0 %v147
  %v267 = vpop.f32.mrf.mxu0
  %v268 = vadd.f32 %v125, %v267
  %v269 = vpop.f32.mrf.mxu0
  %v270 = vadd.f32 %v125, %v269
  %271 = vmatmul.bf16.gmra.mxu0 %v150
  %v272 = vpop.f32.mrf.mxu0
  %v273 = vadd.f32 %v125, %v272
  %v274 = vpop.f32.mrf.mxu0
  %v275 = vadd.f32 %v125, %v274
  %276 = vmatmul.bf16.gmra.mxu0 %v153
  %v277 = vpop.f32.mrf.mxu0
  %v278 = vadd.f32 %v125, %v277
  %v279 = vpop.f32.mrf.mxu0
  %v280 = vadd.f32 %v125, %v279
  %281 = vmatmul.bf16.gmra.mxu0 %v156
  %v282 = vpop.f32.mrf.mxu0
  %v283 = vadd.f32 %v125, %v282
  %v284 = vpop.f32.mrf.mxu0
  %v285 = vadd.f32 %v125, %v284
  %286 = vmatmul.bf16.gmra.mxu0 %v159
  %v287 = vpop.f32.mrf.mxu0
  %v288 = vadd.f32 %v125, %v287
  %v289 = vpop.f32.mrf.mxu0
  %v290 = vadd.f32 %v125, %v289
  %291 = vmatmul.bf16.gmra.mxu0 %v162
  %v292 = vpop.f32.mrf.mxu0
  %v293 = vadd.f32 %v125, %v292
  %v294 = vpop.f32.mrf.mxu0
  %v295 = vadd.f32 %v125, %v294
  %296 = vmatmul.bf16.gmra.mxu0 %v165
  %v297 = vpop.f32.mrf.mxu0
  %v298 = vadd.f32 %v125, %v297
  %v299 = vpop.f32.mrf.mxu0
  %v300 = vadd.f32 %v125, %v299
  %301 = vmatmul.bf16.gmra.mxu0 %v168
  %v302 = vpop.f32.mrf.mxu0
  %v303 = vadd.f32 %v125, %v302
  %v304 = vpop.f32.mrf.mxu0
  %v305 = vadd.f32 %v125, %v304
  %306 = vmatmul.bf16.gmra.mxu0 %v171
  %v307 = vpop.f32.mrf.mxu0
  %v308 = vadd.f32 %v125, %v307
  %v309 = vpop.f32.mrf.mxu0
  %v310 = vadd.f32 %v125, %v309
  %311 = vmatmul.bf16.gmra.mxu0 %v174
  %v312 = vpop.f32.mrf.mxu0
  %v313 = vadd.f32 %v125, %v312
  %v314 = vpop.f32.mrf.mxu0
  %v315 = vadd.f32 %v125, %v314
  %316 = vmatmul.bf16.gmra.mxu0 %v177
  %v317 = vpop.f32.mrf.mxu0
  %v318 = vadd.f32 %v125, %v317
  %v319 = vpop.f32.mrf.mxu0
  %v320 = vadd.f32 %v125, %v319
  %321 = vmatmul.bf16.gmra.mxu0 %v180
  %v322 = vpop.f32.mrf.mxu0
  %v323 = vadd.f32 %v125, %v322
  %v324 = vpop.f32.mrf.mxu0
  %v325 = vadd.f32 %v125, %v324
  %326 = vmatmul.bf16.gmra.mxu0 %v183
  %v327 = vpop.f32.mrf.mxu0
  %v328 = vadd.f32 %v125, %v327
  %v329 = vpop.f32.mrf.mxu0
  %v330 = vadd.f32 %v125, %v329
  %331 = vmatmul.bf16.gmra.mxu0 %v186
  %v332 = vpop.f32.mrf.mxu0
  %v333 = vadd.f32 %v125, %v332
  %v334 = vpop.f32.mrf.mxu0
  %v335 = vadd.f32 %v125, %v334
  %336 = vmatmul.bf16.gmra.mxu0 %v189
  %v337 = vpop.f32.mrf.mxu0
  %v338 = vadd.f32 %v125, %v337
  %v339 = vpop.f32.mrf.mxu0
  %v340 = vadd.f32 %v125, %v339
  %341 = vmatmul.bf16.gmra.mxu0 %v192
  %v342 = vpop.f32.mrf.mxu0
  %v343 = vadd.f32 %v125, %v342
  %v344 = vpop.f32.mrf.mxu0
  %v345 = vadd.f32 %v125, %v344
  %346 = vmatmul.bf16.gmra.mxu0 %v195
  %v347 = vpop.f32.mrf.mxu0
  %v348 = vadd.f32 %v125, %v347
  %v349 = vpop.f32.mrf.mxu0
  %v350 = vadd.f32 %v125, %v349
  %351 = vmatmul.bf16.gmra.mxu0 %v198
  %v352 = vpop.f32.mrf.mxu0
  %v353 = vadd.f32 %v125, %v352
  %v354 = vpop.f32.mrf.mxu0
  %v355 = vadd.f32 %v125, %v354
  %356 = vmatmul.bf16.gmra.mxu0 %v201
  %v357 = vpop.f32.mrf.mxu0
  %v358 = vadd.f32 %v125, %v357
  %v359 = vpop.f32.mrf.mxu0
  %v360 = vadd.f32 %v125, %v359
  %361 = vmatmul.bf16.gmra.mxu0 %v204
  %v362 = vpop.f32.mrf.mxu0
  %v363 = vadd.f32 %v125, %v362
  %v364 = vpop.f32.mrf.mxu0
  %v365 = vadd.f32 %v125, %v364
  %366 = vmatmul.bf16.gmra.mxu0 %v207
  %v367 = vpop.f32.mrf.mxu0
  %v368 = vadd.f32 %v125, %v367
  %v369 = vpop.f32.mrf.mxu0
  %v370 = vadd.f32 %v125, %v369
  %371 = vmatmul.bf16.gmra.mxu0 %v210
  %v372 = vpop.f32.mrf.mxu0
  %v373 = vadd.f32 %v125, %v372
  %v374 = vpop.f32.mrf.mxu0
  %v375 = vadd.f32 %v125, %v374
  %376 = vmatmul.bf16.gmra.mxu0 %v213
  %v377 = vpop.f32.mrf.mxu0
  %v378 = vadd.f32 %v125, %v377
  %v379 = vpop.f32.mrf.mxu0
  %v380 = vadd.f32 %v125, %v379
  %381 = vmatmul.bf16.gmra.mxu0 %v216
  %v382 = vpop.f32.mrf.mxu0
  %v383 = vadd.f32 %v125, %v382
  %v384 = vpop.f32.mrf.mxu0
  %v385 = vadd.f32 %v125, %v384
  %386 = vmatmul.bf16.gmra.mxu0 %v219
  %v387 = vpop.f32.mrf.mxu0
  %v388 = vadd.f32 %v125, %v387
  %v389 = vpop.f32.mrf.mxu0
  %v390 = vadd.f32 %v125, %v389
  %391 = vmatmul.bf16.gmra.mxu0 %v222
  %v392 = vpop.f32.mrf.mxu0
  %v393 = vadd.f32 %v125, %v392
  %v394 = vpop.f32.mrf.mxu0
  %395 = vdwg.mxu0
  %v396 = vtanh.pop %v238
  %v397 = vtanh.pop %v240
  %v398 = vtanh.pop %v243
  %v399 = vtanh.pop %v245
  %v400 = vtanh.pop %v248
  %v401 = vtanh.pop %v250
  %v402 = vtanh.pop %v253
  %v403 = vtanh.pop %v255
  %v404 = vtanh.pop %v258
  %v405 = vtanh.pop %v260
  %v406 = vtanh.pop %v263
  %v407 = vtanh.pop %v265
  %v408 = vtanh.pop %v268
  %v409 = vtanh.pop %v270
  %v410 = vtanh.pop %v273
  %v411 = vtanh.pop %v275
  %v412 = vtanh.pop %v278
  %v413 = vtanh.pop %v280
  %v414 = vtanh.pop %v283
  %v415 = vtanh.pop %v285
  %v416 = vtanh.pop %v288
  %v417 = vtanh.pop %v290
  %v418 = vtanh.pop %v293
  %v419 = vtanh.pop %v295
  %v420 = vtanh.pop %v298
  %v421 = vtanh.pop %v300
  %v422 = vtanh.pop %v303
  %v423 = vtanh.pop %v305
  %v424 = vtanh.pop %v308
  %v425 = vtanh.pop %v310
  %v426 = vtanh.pop %v313
  %v427 = vtanh.pop %v315
  %v428 = vtanh.pop %v318
  %v429 = vtanh.pop %v320
  %v430 = vtanh.pop %v323
  %v431 = vtanh.pop %v325
  %v432 = vtanh.pop %v328
  %v433 = vtanh.pop %v330
  %v434 = vtanh.pop %v333
  %v435 = vtanh.pop %v335
  %v436 = vtanh.pop %v338
  %v437 = vtanh.pop %v340
  %v438 = vtanh.pop %v343
  %v439 = vtanh.pop %v345
  %v440 = vtanh.pop %v348
  %v441 = vtanh.pop %v350
  %v442 = vtanh.pop %v353
  %v443 = vtanh.pop %v355
  %v444 = vtanh.pop %v358
  %v445 = vtanh.pop %v360
  %v446 = vtanh.pop %v363
  %v447 = vtanh.pop %v365
  %v448 = vtanh.pop %v368
  %v449 = vtanh.pop %v370
  %v450 = vtanh.pop %v373
  %v451 = vtanh.pop %v375
  %v452 = vtanh.pop %v378
  %v453 = vtanh.pop %v380
  %v454 = vtanh.pop %v383
  %v455 = vtanh.pop %v385
  %v456 = vtanh.pop %v388
  %v457 = vtanh.pop %v390
  %v458 = vtanh.pop %v393
  %v459 = vpack.c.bf16 %v397, %v396
  %v460 = vpack.c.bf16 %v399, %v398
  %v461 = vpack.c.bf16 %v401, %v400
  %v462 = vpack.c.bf16 %v403, %v402
  %v463 = vpack.c.bf16 %v405, %v404
  %v464 = vpack.c.bf16 %v407, %v406
  %v465 = vpack.c.bf16 %v409, %v408
  %v466 = vpack.c.bf16 %v411, %v410
  %v467 = vpack.c.bf16 %v413, %v412
  %v468 = vpack.c.bf16 %v415, %v414
  %v469 = vpack.c.bf16 %v417, %v416
  %v470 = vpack.c.bf16 %v419, %v418
  %v471 = vpack.c.bf16 %v421, %v420
  %v472 = vpack.c.bf16 %v423, %v422
  %v473 = vpack.c.bf16 %v425, %v424
  %v474 = vpack.c.bf16 %v427, %v426
  %v475 = vpack.c.bf16 %v429, %v428
  %v476 = vpack.c.bf16 %v431, %v430
  %v477 = vpack.c.bf16 %v433, %v432
  %v478 = vpack.c.bf16 %v435, %v434
  %v479 = vpack.c.bf16 %v437, %v436
  %v480 = vpack.c.bf16 %v439, %v438
  %v481 = vpack.c.bf16 %v441, %v440
  %v482 = vpack.c.bf16 %v443, %v442
  %v483 = vpack.c.bf16 %v445, %v444
  %v484 = vpack.c.bf16 %v447, %v446
  %v485 = vpack.c.bf16 %v449, %v448
  %v486 = vpack.c.bf16 %v451, %v450
  %v487 = vpack.c.bf16 %v453, %v452
  %v488 = vpack.c.bf16 %v455, %v454
  %v489 = vpack.c.bf16 %v457, %v456
  %v490 = vpack.c.bf16 %v458, %v458
  %v491 = vld [vmem:[%s3] sm:$0xf]
  %v492 = vld [vmem:[%s3 + $0x4] sm:$0xf]
  %v493 = vld [vmem:[%s3 + $0x8] sm:$0xf]
  %v494 = vld [vmem:[%s3 + $0xc] sm:$0xf]
  %v495 = vld [vmem:[%s3 + $0x10] sm:$0xf]
  %v496 = vld [vmem:[%s3 + $0x14] sm:$0xf]
  %v497 = vld [vmem:[%s3 + $0x18] sm:$0xf]
  %v498 = vld [vmem:[%s3 + $0x1c] sm:$0xf]
  %v499 = vld [vmem:[%s3 + $0x20] sm:$0xf]
  %v500 = vld [vmem:[%s3 + $0x24] sm:$0xf]
  %v501 = vld [vmem:[%s3 + $0x28] sm:$0xf]
  %v502 = vld [vmem:[%s3 + $0x2c] sm:$0xf]
  %v503 = vld [vmem:[%s3 + $0x30] sm:$0xf]
  %v504 = vld [vmem:[%s3 + $0x34] sm:$0xf]
  %v505 = vld [vmem:[%s3 + $0x38] sm:$0xf]
  %v506 = vld [vmem:[%s3 + $0x3c] sm:$0xf]
  %v507 = vld [vmem:[%s4] sm:$0x1]
  %v508 = vperm.slane %v507, 0
  %v525 = vunpack.c.l.b16 %v491
  %v526 = vunpack.c.l.b16 %v492
  %v527 = vunpack.c.l.b16 %v493
  %v528 = vunpack.c.l.b16 %v494
  %v529 = vunpack.c.l.b16 %v495
  %v530 = vunpack.c.l.b16 %v496
  %v531 = vunpack.c.l.b16 %v497
  %v532 = vunpack.c.l.b16 %v498
  %v533 = vunpack.c.l.b16 %v499
  %v534 = vunpack.c.l.b16 %v500
  %v535 = vunpack.c.l.b16 %v501
  %v536 = vunpack.c.l.b16 %v502
  %v537 = vunpack.c.l.b16 %v503
  %v538 = vunpack.c.l.b16 %v504
  %v539 = vunpack.c.l.b16 %v505
  %v540 = vunpack.c.l.b16 %v506
  %v541 = vpack.c.b16 %v526, %v525
  %v542 = vpack.c.b16 %v528, %v527
  %v543 = vpack.c.b16 %v530, %v529
  %v544 = vpack.c.b16 %v532, %v531
  %v545 = vpack.c.b16 %v534, %v533
  %v546 = vpack.c.b16 %v536, %v535
  %v547 = vpack.c.b16 %v538, %v537
  %v548 = vpack.c.b16 %v540, %v539
  %557 = vmatpush.bf16.msra.mxu0 %v548
  %558 = vmatpush.bf16.msra.mxu0 %v547
  %559 = vmatpush.bf16.msra.mxu0 %v546
  %560 = vmatpush.bf16.msra.mxu0 %v545
  %561 = vmatpush.bf16.msra.mxu0 %v544
  %562 = vmatpush.bf16.msra.mxu0 %v543
  %563 = vmatpush.bf16.msra.mxu0 %v542
  %564 = vmatpush.bf16.msra.mxu0 %v541
  %565 = vmatmul.bf16.gmra.mxu0 %v459
  %v566 = vpop.f32.mrf.mxu0
  %v567 = vadd.f32 %v508, %v566
  %v568 = vpop.f32.mrf.mxu0
  %v569 = vadd.f32 %v508, %v568
  %570 = vmatmul.bf16.gmra.mxu0 %v460
  %v571 = vpop.f32.mrf.mxu0
  %v572 = vadd.f32 %v508, %v571
  %v573 = vpop.f32.mrf.mxu0
  %v574 = vadd.f32 %v508, %v573
  %575 = vmatmul.bf16.gmra.mxu0 %v461
  %v576 = vpop.f32.mrf.mxu0
  %v577 = vadd.f32 %v508, %v576
  %v578 = vpop.f32.mrf.mxu0
  %v579 = vadd.f32 %v508, %v578
  %580 = vmatmul.bf16.gmra.mxu0 %v462
  %v581 = vpop.f32.mrf.mxu0
  %v582 = vadd.f32 %v508, %v581
  %v583 = vpop.f32.mrf.mxu0
  %v584 = vadd.f32 %v508, %v583
  %585 = vmatmul.bf16.gmra.mxu0 %v463
  %v586 = vpop.f32.mrf.mxu0
  %v587 = vadd.f32 %v508, %v586
  %v588 = vpop.f32.mrf.mxu0
  %v589 = vadd.f32 %v508, %v588
  %590 = vmatmul.bf16.gmra.mxu0 %v464
  %v591 = vpop.f32.mrf.mxu0
  %v592 = vadd.f32 %v508, %v591
  %v593 = vpop.f32.mrf.mxu0
  %v594 = vadd.f32 %v508, %v593
  %595 = vmatmul.bf16.gmra.mxu0 %v465
  %v596 = vpop.f32.mrf.mxu0
  %v597 = vadd.f32 %v508, %v596
  %v598 = vpop.f32.mrf.mxu0
  %v599 = vadd.f32 %v508, %v598
  %600 = vmatmul.bf16.gmra.mxu0 %v466
  %v601 = vpop.f32.mrf.mxu0
  %v602 = vadd.f32 %v508, %v601
  %v603 = vpop.f32.mrf.mxu0
  %v604 = vadd.f32 %v508, %v603
  %605 = vmatmul.bf16.gmra.mxu0 %v467
  %v606 = vpop.f32.mrf.mxu0
  %v607 = vadd.f32 %v508, %v606
  %v608 = vpop.f32.mrf.mxu0
  %v609 = vadd.f32 %v508, %v608
  %610 = vmatmul.bf16.gmra.mxu0 %v468
  %v611 = vpop.f32.mrf.mxu0
  %v612 = vadd.f32 %v508, %v611
  %v613 = vpop.f32.mrf.mxu0
  %v614 = vadd.f32 %v508, %v613
  %615 = vmatmul.bf16.gmra.mxu0 %v469
  %v616 = vpop.f32.mrf.mxu0
  %v617 = vadd.f32 %v508, %v616
  %v618 = vpop.f32.mrf.mxu0
  %v619 = vadd.f32 %v508, %v618
  %620 = vmatmul.bf16.gmra.mxu0 %v470
  %v621 = vpop.f32.mrf.mxu0
  %v622 = vadd.f32 %v508, %v621
  %v623 = vpop.f32.mrf.mxu0
  %v624 = vadd.f32 %v508, %v623
  %625 = vmatmul.bf16.gmra.mxu0 %v471
  %v626 = vpop.f32.mrf.mxu0
  %v627 = vadd.f32 %v508, %v626
  %v628 = vpop.f32.mrf.mxu0
  %v629 = vadd.f32 %v508, %v628
  %630 = vmatmul.bf16.gmra.mxu0 %v472
  %v631 = vpop.f32.mrf.mxu0
  %v632 = vadd.f32 %v508, %v631
  %v633 = vpop.f32.mrf.mxu0
  %v634 = vadd.f32 %v508, %v633
  %635 = vmatmul.bf16.gmra.mxu0 %v473
  %v636 = vpop.f32.mrf.mxu0
  %v637 = vadd.f32 %v508, %v636
  %v638 = vpop.f32.mrf.mxu0
  %v639 = vadd.f32 %v508, %v638
  %640 = vmatmul.bf16.gmra.mxu0 %v474
  %v641 = vpop.f32.mrf.mxu0
  %v642 = vadd.f32 %v508, %v641
  %v643 = vpop.f32.mrf.mxu0
  %v644 = vadd.f32 %v508, %v643
  %645 = vmatmul.bf16.gmra.mxu0 %v475
  %v646 = vpop.f32.mrf.mxu0
  %v647 = vadd.f32 %v508, %v646
  %v648 = vpop.f32.mrf.mxu0
  %v649 = vadd.f32 %v508, %v648
  %650 = vmatmul.bf16.gmra.mxu0 %v476
  %v651 = vpop.f32.mrf.mxu0
  %v652 = vadd.f32 %v508, %v651
  %v653 = vpop.f32.mrf.mxu0
  %v654 = vadd.f32 %v508, %v653
  %655 = vmatmul.bf16.gmra.mxu0 %v477
  %v656 = vpop.f32.mrf.mxu0
  %v657 = vadd.f32 %v508, %v656
  %v658 = vpop.f32.mrf.mxu0
  %v659 = vadd.f32 %v508, %v658
  %660 = vmatmul.bf16.gmra.mxu0 %v478
  %v661 = vpop.f32.mrf.mxu0
  %v662 = vadd.f32 %v508, %v661
  %v663 = vpop.f32.mrf.mxu0
  %v664 = vadd.f32 %v508, %v663
  %665 = vmatmul.bf16.gmra.mxu0 %v479
  %v666 = vpop.f32.mrf.mxu0
  %v667 = vadd.f32 %v508, %v666
  %v668 = vpop.f32.mrf.mxu0
  %v669 = vadd.f32 %v508, %v668
  %670 = vmatmul.bf16.gmra.mxu0 %v480
  %v671 = vpop.f32.mrf.mxu0
  %v672 = vadd.f32 %v508, %v671
  %v673 = vpop.f32.mrf.mxu0
  %v674 = vadd.f32 %v508, %v673
  %675 = vmatmul.bf16.gmra.mxu0 %v481
  %v676 = vpop.f32.mrf.mxu0
  %v677 = vadd.f32 %v508, %v676
  %v678 = vpop.f32.mrf.mxu0
  %v679 = vadd.f32 %v508, %v678
  %680 = vmatmul.bf16.gmra.mxu0 %v482
  %v681 = vpop.f32.mrf.mxu0
  %v682 = vadd.f32 %v508, %v681
  %v683 = vpop.f32.mrf.mxu0
  %v684 = vadd.f32 %v508, %v683
  %685 = vmatmul.bf16.gmra.mxu0 %v483
  %v686 = vpop.f32.mrf.mxu0
  %v687 = vadd.f32 %v508, %v686
  %v688 = vpop.f32.mrf.mxu0
  %v689 = vadd.f32 %v508, %v688
  %690 = vmatmul.bf16.gmra.mxu0 %v484
  %v691 = vpop.f32.mrf.mxu0
  %v692 = vadd.f32 %v508, %v691
  %v693 = vpop.f32.mrf.mxu0
  %v694 = vadd.f32 %v508, %v693
  %695 = vmatmul.bf16.gmra.mxu0 %v485
  %v696 = vpop.f32.mrf.mxu0
  %v697 = vadd.f32 %v508, %v696
  %v698 = vpop.f32.mrf.mxu0
  %v699 = vadd.f32 %v508, %v698
  %700 = vmatmul.bf16.gmra.mxu0 %v486
  %v701 = vpop.f32.mrf.mxu0
  %v702 = vadd.f32 %v508, %v701
  %v703 = vpop.f32.mrf.mxu0
  %v704 = vadd.f32 %v508, %v703
  %705 = vmatmul.bf16.gmra.mxu0 %v487
  %v706 = vpop.f32.mrf.mxu0
  %v707 = vadd.f32 %v508, %v706
  %v708 = vpop.f32.mrf.mxu0
  %v709 = vadd.f32 %v508, %v708
  %710 = vmatmul.bf16.gmra.mxu0 %v488
  %v711 = vpop.f32.mrf.mxu0
  %v712 = vadd.f32 %v508, %v711
  %v713 = vpop.f32.mrf.mxu0
  %v714 = vadd.f32 %v508, %v713
  %715 = vmatmul.bf16.gmra.mxu0 %v489
  %v716 = vpop.f32.mrf.mxu0
  %v717 = vadd.f32 %v508, %v716
  %v718 = vpop.f32.mrf.mxu0
  %v719 = vadd.f32 %v508, %v718
  %720 = vmatmul.bf16.gmra.mxu0 %v490
  %v721 = vpop.f32.mrf.mxu0
  %v722 = vadd.f32 %v508, %v721
  %v723 = vpop.f32.mrf.mxu0
  %724 = vdwg.mxu0
  %v725 = vtanh.pop %v567
  %v726 = vtanh.pop %v569
  %v727 = vtanh.pop %v572
  %v728 = vtanh.pop %v574
  %v729 = vtanh.pop %v577
  %v730 = vtanh.pop %v579
  %v731 = vtanh.pop %v582
  %v732 = vtanh.pop %v584
  %v733 = vtanh.pop %v587
  %v734 = vtanh.pop %v589
  %v735 = vtanh.pop %v592
  %v736 = vtanh.pop %v594
  %v737 = vtanh.pop %v597
  %v738 = vtanh.pop %v599
  %v739 = vtanh.pop %v602
  %v740 = vtanh.pop %v604
  %v741 = vtanh.pop %v607
  %v742 = vtanh.pop %v609
  %v743 = vtanh.pop %v612
  %v744 = vtanh.pop %v614
  %v745 = vtanh.pop %v617
  %v746 = vtanh.pop %v619
  %v747 = vtanh.pop %v622
  %v748 = vtanh.pop %v624
  %v749 = vtanh.pop %v627
  %v750 = vtanh.pop %v629
  %v751 = vtanh.pop %v632
  %v752 = vtanh.pop %v634
  %v753 = vtanh.pop %v637
  %v754 = vtanh.pop %v639
  %v755 = vtanh.pop %v642
  %v756 = vtanh.pop %v644
  %v757 = vtanh.pop %v647
  %v758 = vtanh.pop %v649
  %v759 = vtanh.pop %v652
  %v760 = vtanh.pop %v654
  %v761 = vtanh.pop %v657
  %v762 = vtanh.pop %v659
  %v763 = vtanh.pop %v662
  %v764 = vtanh.pop %v664
  %v765 = vtanh.pop %v667
  %v766 = vtanh.pop %v669
  %v767 = vtanh.pop %v672
  %v768 = vtanh.pop %v674
  %v769 = vtanh.pop %v677
  %v770 = vtanh.pop %v679
  %v771 = vtanh.pop %v682
  %v772 = vtanh.pop %v684
  %v773 = vtanh.pop %v687
  %v774 = vtanh.pop %v689
  %v775 = vtanh.pop %v692
  %v776 = vtanh.pop %v694
  %v777 = vtanh.pop %v697
  %v778 = vtanh.pop %v699
  %v779 = vtanh.pop %v702
  %v780 = vtanh.pop %v704
  %v781 = vtanh.pop %v707
  %v782 = vtanh.pop %v709
  %v783 = vtanh.pop %v712
  %v784 = vtanh.pop %v714
  %v785 = vtanh.pop %v717
  %v786 = vtanh.pop %v719
  %v787 = vtanh.pop %v722
  %v788 = vpack.c.bf16 %v726, %v725
  %v789 = vpack.c.bf16 %v728, %v727
  %v790 = vpack.c.bf16 %v730, %v729
  %v791 = vpack.c.bf16 %v732, %v731
  %v792 = vpack.c.bf16 %v734, %v733
  %v793 = vpack.c.bf16 %v736, %v735
  %v794 = vpack.c.bf16 %v738, %v737
  %v795 = vpack.c.bf16 %v740, %v739
  %v796 = vpack.c.bf16 %v742, %v741
  %v797 = vpack.c.bf16 %v744, %v743
  %v798 = vpack.c.bf16 %v746, %v745
  %v799 = vpack.c.bf16 %v748, %v747
  %v800 = vpack.c.bf16 %v750, %v749
  %v801 = vpack.c.bf16 %v752, %v751
  %v802 = vpack.c.bf16 %v754, %v753
  %v803 = vpack.c.bf16 %v756, %v755
  %v804 = vpack.c.bf16 %v758, %v757
  %v805 = vpack.c.bf16 %v760, %v759
  %v806 = vpack.c.bf16 %v762, %v761
  %v807 = vpack.c.bf16 %v764, %v763
  %v808 = vpack.c.bf16 %v766, %v765
  %v809 = vpack.c.bf16 %v768, %v767
  %v810 = vpack.c.bf16 %v770, %v769
  %v811 = vpack.c.bf16 %v772, %v771
  %v812 = vpack.c.bf16 %v774, %v773
  %v813 = vpack.c.bf16 %v776, %v775
  %v814 = vpack.c.bf16 %v778, %v777
  %v815 = vpack.c.bf16 %v780, %v779
  %v816 = vpack.c.bf16 %v782, %v781
  %v817 = vpack.c.bf16 %v784, %v783
  %v818 = vpack.c.bf16 %v786, %v785
  %v819 = vpack.c.bf16 %v787, %v787
  %s820 = scalar_lea.vmem %s3, 64
  %v821 = vld [vmem:[%s820] sm:$0xf]
  %v822 = vld [vmem:[%s820 + $0x4] sm:$0xf]
  %v823 = vld [vmem:[%s820 + $0x8] sm:$0xf]
  %v824 = vld [vmem:[%s820 + $0xc] sm:$0xf]
  %v825 = vld [vmem:[%s820 + $0x10] sm:$0xf]
  %v826 = vld [vmem:[%s820 + $0x14] sm:$0xf]
  %v827 = vld [vmem:[%s820 + $0x18] sm:$0xf]
  %v828 = vld [vmem:[%s820 + $0x1c] sm:$0xf]
  %v829 = vld [vmem:[%s820 + $0x20] sm:$0xf]
  %v830 = vld [vmem:[%s820 + $0x24] sm:$0xf]
  %v831 = vld [vmem:[%s820 + $0x28] sm:$0xf]
  %v832 = vld [vmem:[%s820 + $0x2c] sm:$0xf]
  %v833 = vld [vmem:[%s820 + $0x30] sm:$0xf]
  %v834 = vld [vmem:[%s820 + $0x34] sm:$0xf]
  %v835 = vld [vmem:[%s820 + $0x38] sm:$0xf]
  %v836 = vld [vmem:[%s820 + $0x3c] sm:$0xf]
  %v837 = vld [vmem:[%s4 + $0x1] sm:$0x1]
  %v838 = vperm.slane %v837, 0
  %v855 = vunpack.c.l.b16 %v821
  %v856 = vunpack.c.l.b16 %v822
  %v857 = vunpack.c.l.b16 %v823
  %v858 = vunpack.c.l.b16 %v824
  %v859 = vunpack.c.l.b16 %v825
  %v860 = vunpack.c.l.b16 %v826
  %v861 = vunpack.c.l.b16 %v827
  %v862 = vunpack.c.l.b16 %v828
  %v863 = vunpack.c.l.b16 %v829
  %v864 = vunpack.c.l.b16 %v830
  %v865 = vunpack.c.l.b16 %v831
  %v866 = vunpack.c.l.b16 %v832
  %v867 = vunpack.c.l.b16 %v833
  %v868 = vunpack.c.l.b16 %v834
  %v869 = vunpack.c.l.b16 %v835
  %v870 = vunpack.c.l.b16 %v836
  %v871 = vpack.c.b16 %v856, %v855
  %v872 = vpack.c.b16 %v858, %v857
  %v873 = vpack.c.b16 %v860, %v859
  %v874 = vpack.c.b16 %v862, %v861
  %v875 = vpack.c.b16 %v864, %v863
  %v876 = vpack.c.b16 %v866, %v865
  %v877 = vpack.c.b16 %v868, %v867
  %v878 = vpack.c.b16 %v870, %v869
  %887 = vmatpush.bf16.msra.mxu0 %v878
  %888 = vmatpush.bf16.msra.mxu0 %v877
  %889 = vmatpush.bf16.msra.mxu0 %v876
  %890 = vmatpush.bf16.msra.mxu0 %v875
  %891 = vmatpush.bf16.msra.mxu0 %v874
  %892 = vmatpush.bf16.msra.mxu0 %v873
  %893 = vmatpush.bf16.msra.mxu0 %v872
  %894 = vmatpush.bf16.msra.mxu0 %v871
  %895 = vmatmul.bf16.gmra.mxu0 %v788
  %v896 = vpop.f32.mrf.mxu0
  %v897 = vadd.f32 %v838, %v896
  %v898 = vpop.f32.mrf.mxu0
  %v899 = vadd.f32 %v838, %v898
  %900 = vmatmul.bf16.gmra.mxu0 %v789
  %v901 = vpop.f32.mrf.mxu0
  %v902 = vadd.f32 %v838, %v901
  %v903 = vpop.f32.mrf.mxu0
  %v904 = vadd.f32 %v838, %v903
  %905 = vmatmul.bf16.gmra.mxu0 %v790
  %v906 = vpop.f32.mrf.mxu0
  %v907 = vadd.f32 %v838, %v906
  %v908 = vpop.f32.mrf.mxu0
  %v909 = vadd.f32 %v838, %v908
  %910 = vmatmul.bf16.gmra.mxu0 %v791
  %v911 = vpop.f32.mrf.mxu0
  %v912 = vadd.f32 %v838, %v911
  %v913 = vpop.f32.mrf.mxu0
  %v914 = vadd.f32 %v838, %v913
  %915 = vmatmul.bf16.gmra.mxu0 %v792
  %v916 = vpop.f32.mrf.mxu0
  %v917 = vadd.f32 %v838, %v916
  %v918 = vpop.f32.mrf.mxu0
  %v919 = vadd.f32 %v838, %v918
  %920 = vmatmul.bf16.gmra.mxu0 %v793
  %v921 = vpop.f32.mrf.mxu0
  %v922 = vadd.f32 %v838, %v921
  %v923 = vpop.f32.mrf.mxu0
  %v924 = vadd.f32 %v838, %v923
  %925 = vmatmul.bf16.gmra.mxu0 %v794
  %v926 = vpop.f32.mrf.mxu0
  %v927 = vadd.f32 %v838, %v926
  %v928 = vpop.f32.mrf.mxu0
  %v929 = vadd.f32 %v838, %v928
  %930 = vmatmul.bf16.gmra.mxu0 %v795
  %v931 = vpop.f32.mrf.mxu0
  %v932 = vadd.f32 %v838, %v931
  %v933 = vpop.f32.mrf.mxu0
  %v934 = vadd.f32 %v838, %v933
  %935 = vmatmul.bf16.gmra.mxu0 %v796
  %v936 = vpop.f32.mrf.mxu0
  %v937 = vadd.f32 %v838, %v936
  %v938 = vpop.f32.mrf.mxu0
  %v939 = vadd.f32 %v838, %v938
  %940 = vmatmul.bf16.gmra.mxu0 %v797
  %v941 = vpop.f32.mrf.mxu0
  %v942 = vadd.f32 %v838, %v941
  %v943 = vpop.f32.mrf.mxu0
  %v944 = vadd.f32 %v838, %v943
  %945 = vmatmul.bf16.gmra.mxu0 %v798
  %v946 = vpop.f32.mrf.mxu0
  %v947 = vadd.f32 %v838, %v946
  %v948 = vpop.f32.mrf.mxu0
  %v949 = vadd.f32 %v838, %v948
  %950 = vmatmul.bf16.gmra.mxu0 %v799
  %v951 = vpop.f32.mrf.mxu0
  %v952 = vadd.f32 %v838, %v951
  %v953 = vpop.f32.mrf.mxu0
  %v954 = vadd.f32 %v838, %v953
  %955 = vmatmul.bf16.gmra.mxu0 %v800
  %v956 = vpop.f32.mrf.mxu0
  %v957 = vadd.f32 %v838, %v956
  %v958 = vpop.f32.mrf.mxu0
  %v959 = vadd.f32 %v838, %v958
  %960 = vmatmul.bf16.gmra.mxu0 %v801
  %v961 = vpop.f32.mrf.mxu0
  %v962 = vadd.f32 %v838, %v961
  %v963 = vpop.f32.mrf.mxu0
  %v964 = vadd.f32 %v838, %v963
  %965 = vmatmul.bf16.gmra.mxu0 %v802
  %v966 = vpop.f32.mrf.mxu0
  %v967 = vadd.f32 %v838, %v966
  %v968 = vpop.f32.mrf.mxu0
  %v969 = vadd.f32 %v838, %v968
  %970 = vmatmul.bf16.gmra.mxu0 %v803
  %v971 = vpop.f32.mrf.mxu0
  %v972 = vadd.f32 %v838, %v971
  %v973 = vpop.f32.mrf.mxu0
  %v974 = vadd.f32 %v838, %v973
  %975 = vmatmul.bf16.gmra.mxu0 %v804
  %v976 = vpop.f32.mrf.mxu0
  %v977 = vadd.f32 %v838, %v976
  %v978 = vpop.f32.mrf.mxu0
  %v979 = vadd.f32 %v838, %v978
  %980 = vmatmul.bf16.gmra.mxu0 %v805
  %v981 = vpop.f32.mrf.mxu0
  %v982 = vadd.f32 %v838, %v981
  %v983 = vpop.f32.mrf.mxu0
  %v984 = vadd.f32 %v838, %v983
  %985 = vmatmul.bf16.gmra.mxu0 %v806
  %v986 = vpop.f32.mrf.mxu0
  %v987 = vadd.f32 %v838, %v986
  %v988 = vpop.f32.mrf.mxu0
  %v989 = vadd.f32 %v838, %v988
  %990 = vmatmul.bf16.gmra.mxu0 %v807
  %v991 = vpop.f32.mrf.mxu0
  %v992 = vadd.f32 %v838, %v991
  %v993 = vpop.f32.mrf.mxu0
  %v994 = vadd.f32 %v838, %v993
  %995 = vmatmul.bf16.gmra.mxu0 %v808
  %v996 = vpop.f32.mrf.mxu0
  %v997 = vadd.f32 %v838, %v996
  %v998 = vpop.f32.mrf.mxu0
  %v999 = vadd.f32 %v838, %v998
  %1000 = vmatmul.bf16.gmra.mxu0 %v809
  %v1001 = vpop.f32.mrf.mxu0
  %v1002 = vadd.f32 %v838, %v1001
  %v1003 = vpop.f32.mrf.mxu0
  %v1004 = vadd.f32 %v838, %v1003
  %1005 = vmatmul.bf16.gmra.mxu0 %v810
  %v1006 = vpop.f32.mrf.mxu0
  %v1007 = vadd.f32 %v838, %v1006
  %v1008 = vpop.f32.mrf.mxu0
  %v1009 = vadd.f32 %v838, %v1008
  %1010 = vmatmul.bf16.gmra.mxu0 %v811
  %v1011 = vpop.f32.mrf.mxu0
  %v1012 = vadd.f32 %v838, %v1011
  %v1013 = vpop.f32.mrf.mxu0
  %v1014 = vadd.f32 %v838, %v1013
  %1015 = vmatmul.bf16.gmra.mxu0 %v812
  %v1016 = vpop.f32.mrf.mxu0
  %v1017 = vadd.f32 %v838, %v1016
  %v1018 = vpop.f32.mrf.mxu0
  %v1019 = vadd.f32 %v838, %v1018
  %1020 = vmatmul.bf16.gmra.mxu0 %v813
  %v1021 = vpop.f32.mrf.mxu0
  %v1022 = vadd.f32 %v838, %v1021
  %v1023 = vpop.f32.mrf.mxu0
  %v1024 = vadd.f32 %v838, %v1023
  %1025 = vmatmul.bf16.gmra.mxu0 %v814
  %v1026 = vpop.f32.mrf.mxu0
  %v1027 = vadd.f32 %v838, %v1026
  %v1028 = vpop.f32.mrf.mxu0
  %v1029 = vadd.f32 %v838, %v1028
  %1030 = vmatmul.bf16.gmra.mxu0 %v815
  %v1031 = vpop.f32.mrf.mxu0
  %v1032 = vadd.f32 %v838, %v1031
  %v1033 = vpop.f32.mrf.mxu0
  %v1034 = vadd.f32 %v838, %v1033
  %1035 = vmatmul.bf16.gmra.mxu0 %v816
  %v1036 = vpop.f32.mrf.mxu0
  %v1037 = vadd.f32 %v838, %v1036
  %v1038 = vpop.f32.mrf.mxu0
  %v1039 = vadd.f32 %v838, %v1038
  %1040 = vmatmul.bf16.gmra.mxu0 %v817
  %v1041 = vpop.f32.mrf.mxu0
  %v1042 = vadd.f32 %v838, %v1041
  %v1043 = vpop.f32.mrf.mxu0
  %v1044 = vadd.f32 %v838, %v1043
  %1045 = vmatmul.bf16.gmra.mxu0 %v818
  %v1046 = vpop.f32.mrf.mxu0
  %v1047 = vadd.f32 %v838, %v1046
  %v1048 = vpop.f32.mrf.mxu0
  %v1049 = vadd.f32 %v838, %v1048
  %1050 = vmatmul.bf16.gmra.mxu0 %v819
  %v1051 = vpop.f32.mrf.mxu0
  %v1052 = vadd.f32 %v838, %v1051
  %v1053 = vpop.f32.mrf.mxu0
  %1054 = vdwg.mxu0
  %v1055 = vtanh.pop %v897
  %v1056 = vtanh.pop %v899
  %v1057 = vtanh.pop %v902
  %v1058 = vtanh.pop %v904
  %v1059 = vtanh.pop %v907
  %v1060 = vtanh.pop %v909
  %v1061 = vtanh.pop %v912
  %v1062 = vtanh.pop %v914
  %v1063 = vtanh.pop %v917
  %v1064 = vtanh.pop %v919
  %v1065 = vtanh.pop %v922
  %v1066 = vtanh.pop %v924
  %v1067 = vtanh.pop %v927
  %v1068 = vtanh.pop %v929
  %v1069 = vtanh.pop %v932
  %v1070 = vtanh.pop %v934
  %v1071 = vtanh.pop %v937
  %v1072 = vtanh.pop %v939
  %v1073 = vtanh.pop %v942
  %v1074 = vtanh.pop %v944
  %v1075 = vtanh.pop %v947
  %v1076 = vtanh.pop %v949
  %v1077 = vtanh.pop %v952
  %v1078 = vtanh.pop %v954
  %v1079 = vtanh.pop %v957
  %v1080 = vtanh.pop %v959
  %v1081 = vtanh.pop %v962
  %v1082 = vtanh.pop %v964
  %v1083 = vtanh.pop %v967
  %v1084 = vtanh.pop %v969
  %v1085 = vtanh.pop %v972
  %v1086 = vtanh.pop %v974
  %v1087 = vtanh.pop %v977
  %v1088 = vtanh.pop %v979
  %v1089 = vtanh.pop %v982
  %v1090 = vtanh.pop %v984
  %v1091 = vtanh.pop %v987
  %v1092 = vtanh.pop %v989
  %v1093 = vtanh.pop %v992
  %v1094 = vtanh.pop %v994
  %v1095 = vtanh.pop %v997
  %v1096 = vtanh.pop %v999
  %v1097 = vtanh.pop %v1002
  %v1098 = vtanh.pop %v1004
  %v1099 = vtanh.pop %v1007
  %v1100 = vtanh.pop %v1009
  %v1101 = vtanh.pop %v1012
  %v1102 = vtanh.pop %v1014
  %v1103 = vtanh.pop %v1017
  %v1104 = vtanh.pop %v1019
  %v1105 = vtanh.pop %v1022
  %v1106 = vtanh.pop %v1024
  %v1107 = vtanh.pop %v1027
  %v1108 = vtanh.pop %v1029
  %v1109 = vtanh.pop %v1032
  %v1110 = vtanh.pop %v1034
  %v1111 = vtanh.pop %v1037
  %v1112 = vtanh.pop %v1039
  %v1113 = vtanh.pop %v1042
  %v1114 = vtanh.pop %v1044
  %v1115 = vtanh.pop %v1047
  %v1116 = vtanh.pop %v1049
  %v1117 = vtanh.pop %v1052
  %v1118 = vpack.c.bf16 %v1056, %v1055
  %v1119 = vpack.c.bf16 %v1058, %v1057
  %v1120 = vpack.c.bf16 %v1060, %v1059
  %v1121 = vpack.c.bf16 %v1062, %v1061
  %v1122 = vpack.c.bf16 %v1064, %v1063
  %v1123 = vpack.c.bf16 %v1066, %v1065
  %v1124 = vpack.c.bf16 %v1068, %v1067
  %v1125 = vpack.c.bf16 %v1070, %v1069
  %v1126 = vpack.c.bf16 %v1072, %v1071
  %v1127 = vpack.c.bf16 %v1074, %v1073
  %v1128 = vpack.c.bf16 %v1076, %v1075
  %v1129 = vpack.c.bf16 %v1078, %v1077
  %v1130 = vpack.c.bf16 %v1080, %v1079
  %v1131 = vpack.c.bf16 %v1082, %v1081
  %v1132 = vpack.c.bf16 %v1084, %v1083
  %v1133 = vpack.c.bf16 %v1086, %v1085
  %v1134 = vpack.c.bf16 %v1088, %v1087
  %v1135 = vpack.c.bf16 %v1090, %v1089
  %v1136 = vpack.c.bf16 %v1092, %v1091
  %v1137 = vpack.c.bf16 %v1094, %v1093
  %v1138 = vpack.c.bf16 %v1096, %v1095
  %v1139 = vpack.c.bf16 %v1098, %v1097
  %v1140 = vpack.c.bf16 %v1100, %v1099
  %v1141 = vpack.c.bf16 %v1102, %v1101
  %v1142 = vpack.c.bf16 %v1104, %v1103
  %v1143 = vpack.c.bf16 %v1106, %v1105
  %v1144 = vpack.c.bf16 %v1108, %v1107
  %v1145 = vpack.c.bf16 %v1110, %v1109
  %v1146 = vpack.c.bf16 %v1112, %v1111
  %v1147 = vpack.c.bf16 %v1114, %v1113
  %v1148 = vpack.c.bf16 %v1116, %v1115
  %v1149 = vpack.c.bf16 %v1117, %v1117
  %s1150 = scalar_lea.vmem %s3, 128
  %v1151 = vld [vmem:[%s1150] sm:$0xf]
  %v1152 = vld [vmem:[%s1150 + $0x4] sm:$0xf]
  %v1153 = vld [vmem:[%s1150 + $0x8] sm:$0xf]
  %v1154 = vld [vmem:[%s1150 + $0xc] sm:$0xf]
  %v1155 = vld [vmem:[%s1150 + $0x10] sm:$0xf]
  %v1156 = vld [vmem:[%s1150 + $0x14] sm:$0xf]
  %v1157 = vld [vmem:[%s1150 + $0x18] sm:$0xf]
  %v1158 = vld [vmem:[%s1150 + $0x1c] sm:$0xf]
  %v1159 = vld [vmem:[%s1150 + $0x20] sm:$0xf]
  %v1160 = vld [vmem:[%s1150 + $0x24] sm:$0xf]
  %v1161 = vld [vmem:[%s1150 + $0x28] sm:$0xf]
  %v1162 = vld [vmem:[%s1150 + $0x2c] sm:$0xf]
  %v1163 = vld [vmem:[%s1150 + $0x30] sm:$0xf]
  %v1164 = vld [vmem:[%s1150 + $0x34] sm:$0xf]
  %v1165 = vld [vmem:[%s1150 + $0x38] sm:$0xf]
  %v1166 = vld [vmem:[%s1150 + $0x3c] sm:$0xf]
  %v1167 = vld [vmem:[%s4 + $0x2] sm:$0x1]
  %v1168 = vperm.slane %v1167, 0
  %v1185 = vunpack.c.l.b16 %v1151
  %v1186 = vunpack.c.l.b16 %v1152
  %v1187 = vunpack.c.l.b16 %v1153
  %v1188 = vunpack.c.l.b16 %v1154
  %v1189 = vunpack.c.l.b16 %v1155
  %v1190 = vunpack.c.l.b16 %v1156
  %v1191 = vunpack.c.l.b16 %v1157
  %v1192 = vunpack.c.l.b16 %v1158
  %v1193 = vunpack.c.l.b16 %v1159
  %v1194 = vunpack.c.l.b16 %v1160
  %v1195 = vunpack.c.l.b16 %v1161
  %v1196 = vunpack.c.l.b16 %v1162
  %v1197 = vunpack.c.l.b16 %v1163
  %v1198 = vunpack.c.l.b16 %v1164
  %v1199 = vunpack.c.l.b16 %v1165
  %v1200 = vunpack.c.l.b16 %v1166
  %v1201 = vpack.c.b16 %v1186, %v1185
  %v1202 = vpack.c.b16 %v1188, %v1187
  %v1203 = vpack.c.b16 %v1190, %v1189
  %v1204 = vpack.c.b16 %v1192, %v1191
  %v1205 = vpack.c.b16 %v1194, %v1193
  %v1206 = vpack.c.b16 %v1196, %v1195
  %v1207 = vpack.c.b16 %v1198, %v1197
  %v1208 = vpack.c.b16 %v1200, %v1199
  %1217 = vmatpush.bf16.msra.mxu0 %v1208
  %1218 = vmatpush.bf16.msra.mxu0 %v1207
  %1219 = vmatpush.bf16.msra.mxu0 %v1206
  %1220 = vmatpush.bf16.msra.mxu0 %v1205
  %1221 = vmatpush.bf16.msra.mxu0 %v1204
  %1222 = vmatpush.bf16.msra.mxu0 %v1203
  %1223 = vmatpush.bf16.msra.mxu0 %v1202
  %1224 = vmatpush.bf16.msra.mxu0 %v1201
  %1225 = vmatmul.bf16.gmra.mxu0 %v1118
  %v1226 = vpop.f32.mrf.mxu0
  %v1227 = vadd.f32 %v1168, %v1226
  %v1228 = vpop.f32.mrf.mxu0
  %v1229 = vadd.f32 %v1168, %v1228
  %1230 = vmatmul.bf16.gmra.mxu0 %v1119
  %v1231 = vpop.f32.mrf.mxu0
  %v1232 = vadd.f32 %v1168, %v1231
  %v1233 = vpop.f32.mrf.mxu0
  %v1234 = vadd.f32 %v1168, %v1233
  %1235 = vmatmul.bf16.gmra.mxu0 %v1120
  %v1236 = vpop.f32.mrf.mxu0
  %v1237 = vadd.f32 %v1168, %v1236
  %v1238 = vpop.f32.mrf.mxu0
  %v1239 = vadd.f32 %v1168, %v1238
  %1240 = vmatmul.bf16.gmra.mxu0 %v1121
  %v1241 = vpop.f32.mrf.mxu0
  %v1242 = vadd.f32 %v1168, %v1241
  %v1243 = vpop.f32.mrf.mxu0
  %v1244 = vadd.f32 %v1168, %v1243
  %1245 = vmatmul.bf16.gmra.mxu0 %v1122
  %v1246 = vpop.f32.mrf.mxu0
  %v1247 = vadd.f32 %v1168, %v1246
  %v1248 = vpop.f32.mrf.mxu0
  %v1249 = vadd.f32 %v1168, %v1248
  %1250 = vmatmul.bf16.gmra.mxu0 %v1123
  %v1251 = vpop.f32.mrf.mxu0
  %v1252 = vadd.f32 %v1168, %v1251
  %v1253 = vpop.f32.mrf.mxu0
  %v1254 = vadd.f32 %v1168, %v1253
  %1255 = vmatmul.bf16.gmra.mxu0 %v1124
  %v1256 = vpop.f32.mrf.mxu0
  %v1257 = vadd.f32 %v1168, %v1256
  %v1258 = vpop.f32.mrf.mxu0
  %v1259 = vadd.f32 %v1168, %v1258
  %1260 = vmatmul.bf16.gmra.mxu0 %v1125
  %v1261 = vpop.f32.mrf.mxu0
  %v1262 = vadd.f32 %v1168, %v1261
  %v1263 = vpop.f32.mrf.mxu0
  %v1264 = vadd.f32 %v1168, %v1263
  %1265 = vmatmul.bf16.gmra.mxu0 %v1126
  %v1266 = vpop.f32.mrf.mxu0
  %v1267 = vadd.f32 %v1168, %v1266
  %v1268 = vpop.f32.mrf.mxu0
  %v1269 = vadd.f32 %v1168, %v1268
  %1270 = vmatmul.bf16.gmra.mxu0 %v1127
  %v1271 = vpop.f32.mrf.mxu0
  %v1272 = vadd.f32 %v1168, %v1271
  %v1273 = vpop.f32.mrf.mxu0
  %v1274 = vadd.f32 %v1168, %v1273
  %1275 = vmatmul.bf16.gmra.mxu0 %v1128
  %v1276 = vpop.f32.mrf.mxu0
  %v1277 = vadd.f32 %v1168, %v1276
  %v1278 = vpop.f32.mrf.mxu0
  %v1279 = vadd.f32 %v1168, %v1278
  %1280 = vmatmul.bf16.gmra.mxu0 %v1129
  %v1281 = vpop.f32.mrf.mxu0
  %v1282 = vadd.f32 %v1168, %v1281
  %v1283 = vpop.f32.mrf.mxu0
  %v1284 = vadd.f32 %v1168, %v1283
  %1285 = vmatmul.bf16.gmra.mxu0 %v1130
  %v1286 = vpop.f32.mrf.mxu0
  %v1287 = vadd.f32 %v1168, %v1286
  %v1288 = vpop.f32.mrf.mxu0
  %v1289 = vadd.f32 %v1168, %v1288
  %1290 = vmatmul.bf16.gmra.mxu0 %v1131
  %v1291 = vpop.f32.mrf.mxu0
  %v1292 = vadd.f32 %v1168, %v1291
  %v1293 = vpop.f32.mrf.mxu0
  %v1294 = vadd.f32 %v1168, %v1293
  %1295 = vmatmul.bf16.gmra.mxu0 %v1132
  %v1296 = vpop.f32.mrf.mxu0
  %v1297 = vadd.f32 %v1168, %v1296
  %v1298 = vpop.f32.mrf.mxu0
  %v1299 = vadd.f32 %v1168, %v1298
  %1300 = vmatmul.bf16.gmra.mxu0 %v1133
  %v1301 = vpop.f32.mrf.mxu0
  %v1302 = vadd.f32 %v1168, %v1301
  %v1303 = vpop.f32.mrf.mxu0
  %v1304 = vadd.f32 %v1168, %v1303
  %1305 = vmatmul.bf16.gmra.mxu0 %v1134
  %v1306 = vpop.f32.mrf.mxu0
  %v1307 = vadd.f32 %v1168, %v1306
  %v1308 = vpop.f32.mrf.mxu0
  %v1309 = vadd.f32 %v1168, %v1308
  %1310 = vmatmul.bf16.gmra.mxu0 %v1135
  %v1311 = vpop.f32.mrf.mxu0
  %v1312 = vadd.f32 %v1168, %v1311
  %v1313 = vpop.f32.mrf.mxu0
  %v1314 = vadd.f32 %v1168, %v1313
  %1315 = vmatmul.bf16.gmra.mxu0 %v1136
  %v1316 = vpop.f32.mrf.mxu0
  %v1317 = vadd.f32 %v1168, %v1316
  %v1318 = vpop.f32.mrf.mxu0
  %v1319 = vadd.f32 %v1168, %v1318
  %1320 = vmatmul.bf16.gmra.mxu0 %v1137
  %v1321 = vpop.f32.mrf.mxu0
  %v1322 = vadd.f32 %v1168, %v1321
  %v1323 = vpop.f32.mrf.mxu0
  %v1324 = vadd.f32 %v1168, %v1323
  %1325 = vmatmul.bf16.gmra.mxu0 %v1138
  %v1326 = vpop.f32.mrf.mxu0
  %v1327 = vadd.f32 %v1168, %v1326
  %v1328 = vpop.f32.mrf.mxu0
  %v1329 = vadd.f32 %v1168, %v1328
  %1330 = vmatmul.bf16.gmra.mxu0 %v1139
  %v1331 = vpop.f32.mrf.mxu0
  %v1332 = vadd.f32 %v1168, %v1331
  %v1333 = vpop.f32.mrf.mxu0
  %v1334 = vadd.f32 %v1168, %v1333
  %1335 = vmatmul.bf16.gmra.mxu0 %v1140
  %v1336 = vpop.f32.mrf.mxu0
  %v1337 = vadd.f32 %v1168, %v1336
  %v1338 = vpop.f32.mrf.mxu0
  %v1339 = vadd.f32 %v1168, %v1338
  %1340 = vmatmul.bf16.gmra.mxu0 %v1141
  %v1341 = vpop.f32.mrf.mxu0
  %v1342 = vadd.f32 %v1168, %v1341
  %v1343 = vpop.f32.mrf.mxu0
  %v1344 = vadd.f32 %v1168, %v1343
  %1345 = vmatmul.bf16.gmra.mxu0 %v1142
  %v1346 = vpop.f32.mrf.mxu0
  %v1347 = vadd.f32 %v1168, %v1346
  %v1348 = vpop.f32.mrf.mxu0
  %v1349 = vadd.f32 %v1168, %v1348
  %1350 = vmatmul.bf16.gmra.mxu0 %v1143
  %v1351 = vpop.f32.mrf.mxu0
  %v1352 = vadd.f32 %v1168, %v1351
  %v1353 = vpop.f32.mrf.mxu0
  %v1354 = vadd.f32 %v1168, %v1353
  %1355 = vmatmul.bf16.gmra.mxu0 %v1144
  %v1356 = vpop.f32.mrf.mxu0
  %v1357 = vadd.f32 %v1168, %v1356
  %v1358 = vpop.f32.mrf.mxu0
  %v1359 = vadd.f32 %v1168, %v1358
  %1360 = vmatmul.bf16.gmra.mxu0 %v1145
  %v1361 = vpop.f32.mrf.mxu0
  %v1362 = vadd.f32 %v1168, %v1361
  %v1363 = vpop.f32.mrf.mxu0
  %v1364 = vadd.f32 %v1168, %v1363
  %1365 = vmatmul.bf16.gmra.mxu0 %v1146
  %v1366 = vpop.f32.mrf.mxu0
  %v1367 = vadd.f32 %v1168, %v1366
  %v1368 = vpop.f32.mrf.mxu0
  %v1369 = vadd.f32 %v1168, %v1368
  %1370 = vmatmul.bf16.gmra.mxu0 %v1147
  %v1371 = vpop.f32.mrf.mxu0
  %v1372 = vadd.f32 %v1168, %v1371
  %v1373 = vpop.f32.mrf.mxu0
  %v1374 = vadd.f32 %v1168, %v1373
  %1375 = vmatmul.bf16.gmra.mxu0 %v1148
  %v1376 = vpop.f32.mrf.mxu0
  %v1377 = vadd.f32 %v1168, %v1376
  %v1378 = vpop.f32.mrf.mxu0
  %v1379 = vadd.f32 %v1168, %v1378
  %1380 = vmatmul.bf16.gmra.mxu0 %v1149
  %v1381 = vpop.f32.mrf.mxu0
  %v1382 = vadd.f32 %v1168, %v1381
  %v1383 = vpop.f32.mrf.mxu0
  %1384 = vdwg.mxu0
  %v1385 = vtanh.pop %v1227
  %v1386 = vtanh.pop %v1229
  %v1387 = vtanh.pop %v1232
  %v1388 = vtanh.pop %v1234
  %v1389 = vtanh.pop %v1237
  %v1390 = vtanh.pop %v1239
  %v1391 = vtanh.pop %v1242
  %v1392 = vtanh.pop %v1244
  %v1393 = vtanh.pop %v1247
  %v1394 = vtanh.pop %v1249
  %v1395 = vtanh.pop %v1252
  %v1396 = vtanh.pop %v1254
  %v1397 = vtanh.pop %v1257
  %v1398 = vtanh.pop %v1259
  %v1399 = vtanh.pop %v1262
  %v1400 = vtanh.pop %v1264
  %v1401 = vtanh.pop %v1267
  %v1402 = vtanh.pop %v1269
  %v1403 = vtanh.pop %v1272
  %v1404 = vtanh.pop %v1274
  %v1405 = vtanh.pop %v1277
  %v1406 = vtanh.pop %v1279
  %v1407 = vtanh.pop %v1282
  %v1408 = vtanh.pop %v1284
  %v1409 = vtanh.pop %v1287
  %v1410 = vtanh.pop %v1289
  %v1411 = vtanh.pop %v1292
  %v1412 = vtanh.pop %v1294
  %v1413 = vtanh.pop %v1297
  %v1414 = vtanh.pop %v1299
  %v1415 = vtanh.pop %v1302
  %v1416 = vtanh.pop %v1304
  %v1417 = vtanh.pop %v1307
  %v1418 = vtanh.pop %v1309
  %v1419 = vtanh.pop %v1312
  %v1420 = vtanh.pop %v1314
  %v1421 = vtanh.pop %v1317
  %v1422 = vtanh.pop %v1319
  %v1423 = vtanh.pop %v1322
  %v1424 = vtanh.pop %v1324
  %v1425 = vtanh.pop %v1327
  %v1426 = vtanh.pop %v1329
  %v1427 = vtanh.pop %v1332
  %v1428 = vtanh.pop %v1334
  %v1429 = vtanh.pop %v1337
  %v1430 = vtanh.pop %v1339
  %v1431 = vtanh.pop %v1342
  %v1432 = vtanh.pop %v1344
  %v1433 = vtanh.pop %v1347
  %v1434 = vtanh.pop %v1349
  %v1435 = vtanh.pop %v1352
  %v1436 = vtanh.pop %v1354
  %v1437 = vtanh.pop %v1357
  %v1438 = vtanh.pop %v1359
  %v1439 = vtanh.pop %v1362
  %v1440 = vtanh.pop %v1364
  %v1441 = vtanh.pop %v1367
  %v1442 = vtanh.pop %v1369
  %v1443 = vtanh.pop %v1372
  %v1444 = vtanh.pop %v1374
  %v1445 = vtanh.pop %v1377
  %v1446 = vtanh.pop %v1379
  %v1447 = vtanh.pop %v1382
  %v1448 = vpack.c.bf16 %v1386, %v1385
  %v1449 = vpack.c.bf16 %v1388, %v1387
  %v1450 = vpack.c.bf16 %v1390, %v1389
  %v1451 = vpack.c.bf16 %v1392, %v1391
  %v1452 = vpack.c.bf16 %v1394, %v1393
  %v1453 = vpack.c.bf16 %v1396, %v1395
  %v1454 = vpack.c.bf16 %v1398, %v1397
  %v1455 = vpack.c.bf16 %v1400, %v1399
  %v1456 = vpack.c.bf16 %v1402, %v1401
  %v1457 = vpack.c.bf16 %v1404, %v1403
  %v1458 = vpack.c.bf16 %v1406, %v1405
  %v1459 = vpack.c.bf16 %v1408, %v1407
  %v1460 = vpack.c.bf16 %v1410, %v1409
  %v1461 = vpack.c.bf16 %v1412, %v1411
  %v1462 = vpack.c.bf16 %v1414, %v1413
  %v1463 = vpack.c.bf16 %v1416, %v1415
  %v1464 = vpack.c.bf16 %v1418, %v1417
  %v1465 = vpack.c.bf16 %v1420, %v1419
  %v1466 = vpack.c.bf16 %v1422, %v1421
  %v1467 = vpack.c.bf16 %v1424, %v1423
  %v1468 = vpack.c.bf16 %v1426, %v1425
  %v1469 = vpack.c.bf16 %v1428, %v1427
  %v1470 = vpack.c.bf16 %v1430, %v1429
  %v1471 = vpack.c.bf16 %v1432, %v1431
  %v1472 = vpack.c.bf16 %v1434, %v1433
  %v1473 = vpack.c.bf16 %v1436, %v1435
  %v1474 = vpack.c.bf16 %v1438, %v1437
  %v1475 = vpack.c.bf16 %v1440, %v1439
  %v1476 = vpack.c.bf16 %v1442, %v1441
  %v1477 = vpack.c.bf16 %v1444, %v1443
  %v1478 = vpack.c.bf16 %v1446, %v1445
  %v1479 = vpack.c.bf16 %v1447, %v1447
  %s1480 = scalar_lea.vmem %s3, 192
  %v1481 = vld [vmem:[%s1480] sm:$0xf]
  %v1482 = vld [vmem:[%s1480 + $0x4] sm:$0xf]
  %v1483 = vld [vmem:[%s1480 + $0x8] sm:$0xf]
  %v1484 = vld [vmem:[%s1480 + $0xc] sm:$0xf]
  %v1485 = vld [vmem:[%s1480 + $0x10] sm:$0xf]
  %v1486 = vld [vmem:[%s1480 + $0x14] sm:$0xf]
  %v1487 = vld [vmem:[%s1480 + $0x18] sm:$0xf]
  %v1488 = vld [vmem:[%s1480 + $0x1c] sm:$0xf]
  %v1489 = vld [vmem:[%s1480 + $0x20] sm:$0xf]
  %v1490 = vld [vmem:[%s1480 + $0x24] sm:$0xf]
  %v1491 = vld [vmem:[%s1480 + $0x28] sm:$0xf]
  %v1492 = vld [vmem:[%s1480 + $0x2c] sm:$0xf]
  %v1493 = vld [vmem:[%s1480 + $0x30] sm:$0xf]
  %v1494 = vld [vmem:[%s1480 + $0x34] sm:$0xf]
  %v1495 = vld [vmem:[%s1480 + $0x38] sm:$0xf]
  %v1496 = vld [vmem:[%s1480 + $0x3c] sm:$0xf]
  %v1497 = vld [vmem:[%s4 + $0x3] sm:$0x1]
  %v1498 = vperm.slane %v1497, 0
  %v1515 = vunpack.c.l.b16 %v1481
  %v1516 = vunpack.c.l.b16 %v1482
  %v1517 = vunpack.c.l.b16 %v1483
  %v1518 = vunpack.c.l.b16 %v1484
  %v1519 = vunpack.c.l.b16 %v1485
  %v1520 = vunpack.c.l.b16 %v1486
  %v1521 = vunpack.c.l.b16 %v1487
  %v1522 = vunpack.c.l.b16 %v1488
  %v1523 = vunpack.c.l.b16 %v1489
  %v1524 = vunpack.c.l.b16 %v1490
  %v1525 = vunpack.c.l.b16 %v1491
  %v1526 = vunpack.c.l.b16 %v1492
  %v1527 = vunpack.c.l.b16 %v1493
  %v1528 = vunpack.c.l.b16 %v1494
  %v1529 = vunpack.c.l.b16 %v1495
  %v1530 = vunpack.c.l.b16 %v1496
  %v1531 = vpack.c.b16 %v1516, %v1515
  %v1532 = vpack.c.b16 %v1518, %v1517
  %v1533 = vpack.c.b16 %v1520, %v1519
  %v1534 = vpack.c.b16 %v1522, %v1521
  %v1535 = vpack.c.b16 %v1524, %v1523
  %v1536 = vpack.c.b16 %v1526, %v1525
  %v1537 = vpack.c.b16 %v1528, %v1527
  %v1538 = vpack.c.b16 %v1530, %v1529
  %1547 = vmatpush.bf16.msra.mxu0 %v1538
  %1548 = vmatpush.bf16.msra.mxu0 %v1537
  %1549 = vmatpush.bf16.msra.mxu0 %v1536
  %1550 = vmatpush.bf16.msra.mxu0 %v1535
  %1551 = vmatpush.bf16.msra.mxu0 %v1534
  %1552 = vmatpush.bf16.msra.mxu0 %v1533
  %1553 = vmatpush.bf16.msra.mxu0 %v1532
  %1554 = vmatpush.bf16.msra.mxu0 %v1531
  %1555 = vmatmul.bf16.gmra.mxu0 %v1448
  %v1556 = vpop.f32.mrf.mxu0
  %v1557 = vadd.f32 %v1498, %v1556
  %v1558 = vpop.f32.mrf.mxu0
  %v1559 = vadd.f32 %v1498, %v1558
  %1560 = vmatmul.bf16.gmra.mxu0 %v1449
  %v1561 = vpop.f32.mrf.mxu0
  %v1562 = vadd.f32 %v1498, %v1561
  %v1563 = vpop.f32.mrf.mxu0
  %v1564 = vadd.f32 %v1498, %v1563
  %1565 = vmatmul.bf16.gmra.mxu0 %v1450
  %v1566 = vpop.f32.mrf.mxu0
  %v1567 = vadd.f32 %v1498, %v1566
  %v1568 = vpop.f32.mrf.mxu0
  %v1569 = vadd.f32 %v1498, %v1568
  %1570 = vmatmul.bf16.gmra.mxu0 %v1451
  %v1571 = vpop.f32.mrf.mxu0
  %v1572 = vadd.f32 %v1498, %v1571
  %v1573 = vpop.f32.mrf.mxu0
  %v1574 = vadd.f32 %v1498, %v1573
  %1575 = vmatmul.bf16.gmra.mxu0 %v1452
  %v1576 = vpop.f32.mrf.mxu0
  %v1577 = vadd.f32 %v1498, %v1576
  %v1578 = vpop.f32.mrf.mxu0
  %v1579 = vadd.f32 %v1498, %v1578
  %1580 = vmatmul.bf16.gmra.mxu0 %v1453
  %v1581 = vpop.f32.mrf.mxu0
  %v1582 = vadd.f32 %v1498, %v1581
  %v1583 = vpop.f32.mrf.mxu0
  %v1584 = vadd.f32 %v1498, %v1583
  %1585 = vmatmul.bf16.gmra.mxu0 %v1454
  %v1586 = vpop.f32.mrf.mxu0
  %v1587 = vadd.f32 %v1498, %v1586
  %v1588 = vpop.f32.mrf.mxu0
  %v1589 = vadd.f32 %v1498, %v1588
  %1590 = vmatmul.bf16.gmra.mxu0 %v1455
  %v1591 = vpop.f32.mrf.mxu0
  %v1592 = vadd.f32 %v1498, %v1591
  %v1593 = vpop.f32.mrf.mxu0
  %v1594 = vadd.f32 %v1498, %v1593
  %1595 = vmatmul.bf16.gmra.mxu0 %v1456
  %v1596 = vpop.f32.mrf.mxu0
  %v1597 = vadd.f32 %v1498, %v1596
  %v1598 = vpop.f32.mrf.mxu0
  %v1599 = vadd.f32 %v1498, %v1598
  %1600 = vmatmul.bf16.gmra.mxu0 %v1457
  %v1601 = vpop.f32.mrf.mxu0
  %v1602 = vadd.f32 %v1498, %v1601
  %v1603 = vpop.f32.mrf.mxu0
  %v1604 = vadd.f32 %v1498, %v1603
  %1605 = vmatmul.bf16.gmra.mxu0 %v1458
  %v1606 = vpop.f32.mrf.mxu0
  %v1607 = vadd.f32 %v1498, %v1606
  %v1608 = vpop.f32.mrf.mxu0
  %v1609 = vadd.f32 %v1498, %v1608
  %1610 = vmatmul.bf16.gmra.mxu0 %v1459
  %v1611 = vpop.f32.mrf.mxu0
  %v1612 = vadd.f32 %v1498, %v1611
  %v1613 = vpop.f32.mrf.mxu0
  %v1614 = vadd.f32 %v1498, %v1613
  %1615 = vmatmul.bf16.gmra.mxu0 %v1460
  %v1616 = vpop.f32.mrf.mxu0
  %v1617 = vadd.f32 %v1498, %v1616
  %v1618 = vpop.f32.mrf.mxu0
  %v1619 = vadd.f32 %v1498, %v1618
  %1620 = vmatmul.bf16.gmra.mxu0 %v1461
  %v1621 = vpop.f32.mrf.mxu0
  %v1622 = vadd.f32 %v1498, %v1621
  %v1623 = vpop.f32.mrf.mxu0
  %v1624 = vadd.f32 %v1498, %v1623
  %1625 = vmatmul.bf16.gmra.mxu0 %v1462
  %v1626 = vpop.f32.mrf.mxu0
  %v1627 = vadd.f32 %v1498, %v1626
  %v1628 = vpop.f32.mrf.mxu0
  %v1629 = vadd.f32 %v1498, %v1628
  %1630 = vmatmul.bf16.gmra.mxu0 %v1463
  %v1631 = vpop.f32.mrf.mxu0
  %v1632 = vadd.f32 %v1498, %v1631
  %v1633 = vpop.f32.mrf.mxu0
  %v1634 = vadd.f32 %v1498, %v1633
  %1635 = vmatmul.bf16.gmra.mxu0 %v1464
  %v1636 = vpop.f32.mrf.mxu0
  %v1637 = vadd.f32 %v1498, %v1636
  %v1638 = vpop.f32.mrf.mxu0
  %v1639 = vadd.f32 %v1498, %v1638
  %1640 = vmatmul.bf16.gmra.mxu0 %v1465
  %v1641 = vpop.f32.mrf.mxu0
  %v1642 = vadd.f32 %v1498, %v1641
  %v1643 = vpop.f32.mrf.mxu0
  %v1644 = vadd.f32 %v1498, %v1643
  %1645 = vmatmul.bf16.gmra.mxu0 %v1466
  %v1646 = vpop.f32.mrf.mxu0
  %v1647 = vadd.f32 %v1498, %v1646
  %v1648 = vpop.f32.mrf.mxu0
  %v1649 = vadd.f32 %v1498, %v1648
  %1650 = vmatmul.bf16.gmra.mxu0 %v1467
  %v1651 = vpop.f32.mrf.mxu0
  %v1652 = vadd.f32 %v1498, %v1651
  %v1653 = vpop.f32.mrf.mxu0
  %v1654 = vadd.f32 %v1498, %v1653
  %1655 = vmatmul.bf16.gmra.mxu0 %v1468
  %v1656 = vpop.f32.mrf.mxu0
  %v1657 = vadd.f32 %v1498, %v1656
  %v1658 = vpop.f32.mrf.mxu0
  %v1659 = vadd.f32 %v1498, %v1658
  %1660 = vmatmul.bf16.gmra.mxu0 %v1469
  %v1661 = vpop.f32.mrf.mxu0
  %v1662 = vadd.f32 %v1498, %v1661
  %v1663 = vpop.f32.mrf.mxu0
  %v1664 = vadd.f32 %v1498, %v1663
  %1665 = vmatmul.bf16.gmra.mxu0 %v1470
  %v1666 = vpop.f32.mrf.mxu0
  %v1667 = vadd.f32 %v1498, %v1666
  %v1668 = vpop.f32.mrf.mxu0
  %v1669 = vadd.f32 %v1498, %v1668
  %1670 = vmatmul.bf16.gmra.mxu0 %v1471
  %v1671 = vpop.f32.mrf.mxu0
  %v1672 = vadd.f32 %v1498, %v1671
  %v1673 = vpop.f32.mrf.mxu0
  %v1674 = vadd.f32 %v1498, %v1673
  %1675 = vmatmul.bf16.gmra.mxu0 %v1472
  %v1676 = vpop.f32.mrf.mxu0
  %v1677 = vadd.f32 %v1498, %v1676
  %v1678 = vpop.f32.mrf.mxu0
  %v1679 = vadd.f32 %v1498, %v1678
  %1680 = vmatmul.bf16.gmra.mxu0 %v1473
  %v1681 = vpop.f32.mrf.mxu0
  %v1682 = vadd.f32 %v1498, %v1681
  %v1683 = vpop.f32.mrf.mxu0
  %v1684 = vadd.f32 %v1498, %v1683
  %1685 = vmatmul.bf16.gmra.mxu0 %v1474
  %v1686 = vpop.f32.mrf.mxu0
  %v1687 = vadd.f32 %v1498, %v1686
  %v1688 = vpop.f32.mrf.mxu0
  %v1689 = vadd.f32 %v1498, %v1688
  %1690 = vmatmul.bf16.gmra.mxu0 %v1475
  %v1691 = vpop.f32.mrf.mxu0
  %v1692 = vadd.f32 %v1498, %v1691
  %v1693 = vpop.f32.mrf.mxu0
  %v1694 = vadd.f32 %v1498, %v1693
  %1695 = vmatmul.bf16.gmra.mxu0 %v1476
  %v1696 = vpop.f32.mrf.mxu0
  %v1697 = vadd.f32 %v1498, %v1696
  %v1698 = vpop.f32.mrf.mxu0
  %v1699 = vadd.f32 %v1498, %v1698
  %1700 = vmatmul.bf16.gmra.mxu0 %v1477
  %v1701 = vpop.f32.mrf.mxu0
  %v1702 = vadd.f32 %v1498, %v1701
  %v1703 = vpop.f32.mrf.mxu0
  %v1704 = vadd.f32 %v1498, %v1703
  %1705 = vmatmul.bf16.gmra.mxu0 %v1478
  %v1706 = vpop.f32.mrf.mxu0
  %v1707 = vadd.f32 %v1498, %v1706
  %v1708 = vpop.f32.mrf.mxu0
  %v1709 = vadd.f32 %v1498, %v1708
  %1710 = vmatmul.bf16.gmra.mxu0 %v1479
  %v1711 = vpop.f32.mrf.mxu0
  %v1712 = vadd.f32 %v1498, %v1711
  %v1713 = vpop.f32.mrf.mxu0
  %1714 = vdwg.mxu0
  %v1715 = vtanh.pop %v1557
  %v1716 = vtanh.pop %v1559
  %v1717 = vtanh.pop %v1562
  %v1718 = vtanh.pop %v1564
  %v1719 = vtanh.pop %v1567
  %v1720 = vtanh.pop %v1569
  %v1721 = vtanh.pop %v1572
  %v1722 = vtanh.pop %v1574
  %v1723 = vtanh.pop %v1577
  %v1724 = vtanh.pop %v1579
  %v1725 = vtanh.pop %v1582
  %v1726 = vtanh.pop %v1584
  %v1727 = vtanh.pop %v1587
  %v1728 = vtanh.pop %v1589
  %v1729 = vtanh.pop %v1592
  %v1730 = vtanh.pop %v1594
  %v1731 = vtanh.pop %v1597
  %v1732 = vtanh.pop %v1599
  %v1733 = vtanh.pop %v1602
  %v1734 = vtanh.pop %v1604
  %v1735 = vtanh.pop %v1607
  %v1736 = vtanh.pop %v1609
  %v1737 = vtanh.pop %v1612
  %v1738 = vtanh.pop %v1614
  %v1739 = vtanh.pop %v1617
  %v1740 = vtanh.pop %v1619
  %v1741 = vtanh.pop %v1622
  %v1742 = vtanh.pop %v1624
  %v1743 = vtanh.pop %v1627
  %v1744 = vtanh.pop %v1629
  %v1745 = vtanh.pop %v1632
  %v1746 = vtanh.pop %v1634
  %v1747 = vtanh.pop %v1637
  %v1748 = vtanh.pop %v1639
  %v1749 = vtanh.pop %v1642
  %v1750 = vtanh.pop %v1644
  %v1751 = vtanh.pop %v1647
  %v1752 = vtanh.pop %v1649
  %v1753 = vtanh.pop %v1652
  %v1754 = vtanh.pop %v1654
  %v1755 = vtanh.pop %v1657
  %v1756 = vtanh.pop %v1659
  %v1757 = vtanh.pop %v1662
  %v1758 = vtanh.pop %v1664
  %v1759 = vtanh.pop %v1667
  %v1760 = vtanh.pop %v1669
  %v1761 = vtanh.pop %v1672
  %v1762 = vtanh.pop %v1674
  %v1763 = vtanh.pop %v1677
  %v1764 = vtanh.pop %v1679
  %v1765 = vtanh.pop %v1682
  %v1766 = vtanh.pop %v1684
  %v1767 = vtanh.pop %v1687
  %v1768 = vtanh.pop %v1689
  %v1769 = vtanh.pop %v1692
  %v1770 = vtanh.pop %v1694
  %v1771 = vtanh.pop %v1697
  %v1772 = vtanh.pop %v1699
  %v1773 = vtanh.pop %v1702
  %v1774 = vtanh.pop %v1704
  %v1775 = vtanh.pop %v1707
  %v1776 = vtanh.pop %v1709
  %v1777 = vtanh.pop %v1712
  %v1778 = vpack.c.bf16 %v1716, %v1715
  %v1779 = vpack.c.bf16 %v1718, %v1717
  %v1780 = vpack.c.bf16 %v1720, %v1719
  %v1781 = vpack.c.bf16 %v1722, %v1721
  %v1782 = vpack.c.bf16 %v1724, %v1723
  %v1783 = vpack.c.bf16 %v1726, %v1725
  %v1784 = vpack.c.bf16 %v1728, %v1727
  %v1785 = vpack.c.bf16 %v1730, %v1729
  %v1786 = vpack.c.bf16 %v1732, %v1731
  %v1787 = vpack.c.bf16 %v1734, %v1733
  %v1788 = vpack.c.bf16 %v1736, %v1735
  %v1789 = vpack.c.bf16 %v1738, %v1737
  %v1790 = vpack.c.bf16 %v1740, %v1739
  %v1791 = vpack.c.bf16 %v1742, %v1741
  %v1792 = vpack.c.bf16 %v1744, %v1743
  %v1793 = vpack.c.bf16 %v1746, %v1745
  %v1794 = vpack.c.bf16 %v1748, %v1747
  %v1795 = vpack.c.bf16 %v1750, %v1749
  %v1796 = vpack.c.bf16 %v1752, %v1751
  %v1797 = vpack.c.bf16 %v1754, %v1753
  %v1798 = vpack.c.bf16 %v1756, %v1755
  %v1799 = vpack.c.bf16 %v1758, %v1757
  %v1800 = vpack.c.bf16 %v1760, %v1759
  %v1801 = vpack.c.bf16 %v1762, %v1761
  %v1802 = vpack.c.bf16 %v1764, %v1763
  %v1803 = vpack.c.bf16 %v1766, %v1765
  %v1804 = vpack.c.bf16 %v1768, %v1767
  %v1805 = vpack.c.bf16 %v1770, %v1769
  %v1806 = vpack.c.bf16 %v1772, %v1771
  %v1807 = vpack.c.bf16 %v1774, %v1773
  %v1808 = vpack.c.bf16 %v1776, %v1775
  %v1809 = vpack.c.bf16 %v1777, %v1777
  %s1810 = scalar_lea.vmem %s3, 256
  %v1811 = vld [vmem:[%s1810] sm:$0xf]
  %v1812 = vld [vmem:[%s1810 + $0x4] sm:$0xf]
  %v1813 = vld [vmem:[%s1810 + $0x8] sm:$0xf]
  %v1814 = vld [vmem:[%s1810 + $0xc] sm:$0xf]
  %v1815 = vld [vmem:[%s1810 + $0x10] sm:$0xf]
  %v1816 = vld [vmem:[%s1810 + $0x14] sm:$0xf]
  %v1817 = vld [vmem:[%s1810 + $0x18] sm:$0xf]
  %v1818 = vld [vmem:[%s1810 + $0x1c] sm:$0xf]
  %v1819 = vld [vmem:[%s1810 + $0x20] sm:$0xf]
  %v1820 = vld [vmem:[%s1810 + $0x24] sm:$0xf]
  %v1821 = vld [vmem:[%s1810 + $0x28] sm:$0xf]
  %v1822 = vld [vmem:[%s1810 + $0x2c] sm:$0xf]
  %v1823 = vld [vmem:[%s1810 + $0x30] sm:$0xf]
  %v1824 = vld [vmem:[%s1810 + $0x34] sm:$0xf]
  %v1825 = vld [vmem:[%s1810 + $0x38] sm:$0xf]
  %v1826 = vld [vmem:[%s1810 + $0x3c] sm:$0xf]
  %v1827 = vld [vmem:[%s4 + $0x4] sm:$0x1]
  %v1828 = vperm.slane %v1827, 0
  %v1845 = vunpack.c.l.b16 %v1811
  %v1846 = vunpack.c.l.b16 %v1812
  %v1847 = vunpack.c.l.b16 %v1813
  %v1848 = vunpack.c.l.b16 %v1814
  %v1849 = vunpack.c.l.b16 %v1815
  %v1850 = vunpack.c.l.b16 %v1816
  %v1851 = vunpack.c.l.b16 %v1817
  %v1852 = vunpack.c.l.b16 %v1818
  %v1853 = vunpack.c.l.b16 %v1819
  %v1854 = vunpack.c.l.b16 %v1820
  %v1855 = vunpack.c.l.b16 %v1821
  %v1856 = vunpack.c.l.b16 %v1822
  %v1857 = vunpack.c.l.b16 %v1823
  %v1858 = vunpack.c.l.b16 %v1824
  %v1859 = vunpack.c.l.b16 %v1825
  %v1860 = vunpack.c.l.b16 %v1826
  %v1861 = vpack.c.b16 %v1846, %v1845
  %v1862 = vpack.c.b16 %v1848, %v1847
  %v1863 = vpack.c.b16 %v1850, %v1849
  %v1864 = vpack.c.b16 %v1852, %v1851
  %v1865 = vpack.c.b16 %v1854, %v1853
  %v1866 = vpack.c.b16 %v1856, %v1855
  %v1867 = vpack.c.b16 %v1858, %v1857
  %v1868 = vpack.c.b16 %v1860, %v1859
  %1877 = vmatpush.bf16.msra.mxu0 %v1868
  %1878 = vmatpush.bf16.msra.mxu0 %v1867
  %1879 = vmatpush.bf16.msra.mxu0 %v1866
  %1880 = vmatpush.bf16.msra.mxu0 %v1865
  %1881 = vmatpush.bf16.msra.mxu0 %v1864
  %1882 = vmatpush.bf16.msra.mxu0 %v1863
  %1883 = vmatpush.bf16.msra.mxu0 %v1862
  %1884 = vmatpush.bf16.msra.mxu0 %v1861
  %1885 = vmatmul.bf16.gmra.mxu0 %v1778
  %v1886 = vpop.f32.mrf.mxu0
  %v1887 = vadd.f32 %v1828, %v1886
  %v1888 = vpop.f32.mrf.mxu0
  %v1889 = vadd.f32 %v1828, %v1888
  %1890 = vmatmul.bf16.gmra.mxu0 %v1779
  %v1891 = vpop.f32.mrf.mxu0
  %v1892 = vadd.f32 %v1828, %v1891
  %v1893 = vpop.f32.mrf.mxu0
  %v1894 = vadd.f32 %v1828, %v1893
  %1895 = vmatmul.bf16.gmra.mxu0 %v1780
  %v1896 = vpop.f32.mrf.mxu0
  %v1897 = vadd.f32 %v1828, %v1896
  %v1898 = vpop.f32.mrf.mxu0
  %v1899 = vadd.f32 %v1828, %v1898
  %1900 = vmatmul.bf16.gmra.mxu0 %v1781
  %v1901 = vpop.f32.mrf.mxu0
  %v1902 = vadd.f32 %v1828, %v1901
  %v1903 = vpop.f32.mrf.mxu0
  %v1904 = vadd.f32 %v1828, %v1903
  %1905 = vmatmul.bf16.gmra.mxu0 %v1782
  %v1906 = vpop.f32.mrf.mxu0
  %v1907 = vadd.f32 %v1828, %v1906
  %v1908 = vpop.f32.mrf.mxu0
  %v1909 = vadd.f32 %v1828, %v1908
  %1910 = vmatmul.bf16.gmra.mxu0 %v1783
  %v1911 = vpop.f32.mrf.mxu0
  %v1912 = vadd.f32 %v1828, %v1911
  %v1913 = vpop.f32.mrf.mxu0
  %v1914 = vadd.f32 %v1828, %v1913
  %1915 = vmatmul.bf16.gmra.mxu0 %v1784
  %v1916 = vpop.f32.mrf.mxu0
  %v1917 = vadd.f32 %v1828, %v1916
  %v1918 = vpop.f32.mrf.mxu0
  %v1919 = vadd.f32 %v1828, %v1918
  %1920 = vmatmul.bf16.gmra.mxu0 %v1785
  %v1921 = vpop.f32.mrf.mxu0
  %v1922 = vadd.f32 %v1828, %v1921
  %v1923 = vpop.f32.mrf.mxu0
  %v1924 = vadd.f32 %v1828, %v1923
  %1925 = vmatmul.bf16.gmra.mxu0 %v1786
  %v1926 = vpop.f32.mrf.mxu0
  %v1927 = vadd.f32 %v1828, %v1926
  %v1928 = vpop.f32.mrf.mxu0
  %v1929 = vadd.f32 %v1828, %v1928
  %1930 = vmatmul.bf16.gmra.mxu0 %v1787
  %v1931 = vpop.f32.mrf.mxu0
  %v1932 = vadd.f32 %v1828, %v1931
  %v1933 = vpop.f32.mrf.mxu0
  %v1934 = vadd.f32 %v1828, %v1933
  %1935 = vmatmul.bf16.gmra.mxu0 %v1788
  %v1936 = vpop.f32.mrf.mxu0
  %v1937 = vadd.f32 %v1828, %v1936
  %v1938 = vpop.f32.mrf.mxu0
  %v1939 = vadd.f32 %v1828, %v1938
  %1940 = vmatmul.bf16.gmra.mxu0 %v1789
  %v1941 = vpop.f32.mrf.mxu0
  %v1942 = vadd.f32 %v1828, %v1941
  %v1943 = vpop.f32.mrf.mxu0
  %v1944 = vadd.f32 %v1828, %v1943
  %1945 = vmatmul.bf16.gmra.mxu0 %v1790
  %v1946 = vpop.f32.mrf.mxu0
  %v1947 = vadd.f32 %v1828, %v1946
  %v1948 = vpop.f32.mrf.mxu0
  %v1949 = vadd.f32 %v1828, %v1948
  %1950 = vmatmul.bf16.gmra.mxu0 %v1791
  %v1951 = vpop.f32.mrf.mxu0
  %v1952 = vadd.f32 %v1828, %v1951
  %v1953 = vpop.f32.mrf.mxu0
  %v1954 = vadd.f32 %v1828, %v1953
  %1955 = vmatmul.bf16.gmra.mxu0 %v1792
  %v1956 = vpop.f32.mrf.mxu0
  %v1957 = vadd.f32 %v1828, %v1956
  %v1958 = vpop.f32.mrf.mxu0
  %v1959 = vadd.f32 %v1828, %v1958
  %1960 = vmatmul.bf16.gmra.mxu0 %v1793
  %v1961 = vpop.f32.mrf.mxu0
  %v1962 = vadd.f32 %v1828, %v1961
  %v1963 = vpop.f32.mrf.mxu0
  %v1964 = vadd.f32 %v1828, %v1963
  %1965 = vmatmul.bf16.gmra.mxu0 %v1794
  %v1966 = vpop.f32.mrf.mxu0
  %v1967 = vadd.f32 %v1828, %v1966
  %v1968 = vpop.f32.mrf.mxu0
  %v1969 = vadd.f32 %v1828, %v1968
  %1970 = vmatmul.bf16.gmra.mxu0 %v1795
  %v1971 = vpop.f32.mrf.mxu0
  %v1972 = vadd.f32 %v1828, %v1971
  %v1973 = vpop.f32.mrf.mxu0
  %v1974 = vadd.f32 %v1828, %v1973
  %1975 = vmatmul.bf16.gmra.mxu0 %v1796
  %v1976 = vpop.f32.mrf.mxu0
  %v1977 = vadd.f32 %v1828, %v1976
  %v1978 = vpop.f32.mrf.mxu0
  %v1979 = vadd.f32 %v1828, %v1978
  %1980 = vmatmul.bf16.gmra.mxu0 %v1797
  %v1981 = vpop.f32.mrf.mxu0
  %v1982 = vadd.f32 %v1828, %v1981
  %v1983 = vpop.f32.mrf.mxu0
  %v1984 = vadd.f32 %v1828, %v1983
  %1985 = vmatmul.bf16.gmra.mxu0 %v1798
  %v1986 = vpop.f32.mrf.mxu0
  %v1987 = vadd.f32 %v1828, %v1986
  %v1988 = vpop.f32.mrf.mxu0
  %v1989 = vadd.f32 %v1828, %v1988
  %1990 = vmatmul.bf16.gmra.mxu0 %v1799
  %v1991 = vpop.f32.mrf.mxu0
  %v1992 = vadd.f32 %v1828, %v1991
  %v1993 = vpop.f32.mrf.mxu0
  %v1994 = vadd.f32 %v1828, %v1993
  %1995 = vmatmul.bf16.gmra.mxu0 %v1800
  %v1996 = vpop.f32.mrf.mxu0
  %v1997 = vadd.f32 %v1828, %v1996
  %v1998 = vpop.f32.mrf.mxu0
  %v1999 = vadd.f32 %v1828, %v1998
  %2000 = vmatmul.bf16.gmra.mxu0 %v1801
  %v2001 = vpop.f32.mrf.mxu0
  %v2002 = vadd.f32 %v1828, %v2001
  %v2003 = vpop.f32.mrf.mxu0
  %v2004 = vadd.f32 %v1828, %v2003
  %2005 = vmatmul.bf16.gmra.mxu0 %v1802
  %v2006 = vpop.f32.mrf.mxu0
  %v2007 = vadd.f32 %v1828, %v2006
  %v2008 = vpop.f32.mrf.mxu0
  %v2009 = vadd.f32 %v1828, %v2008
  %2010 = vmatmul.bf16.gmra.mxu0 %v1803
  %v2011 = vpop.f32.mrf.mxu0
  %v2012 = vadd.f32 %v1828, %v2011
  %v2013 = vpop.f32.mrf.mxu0
  %v2014 = vadd.f32 %v1828, %v2013
  %2015 = vmatmul.bf16.gmra.mxu0 %v1804
  %v2016 = vpop.f32.mrf.mxu0
  %v2017 = vadd.f32 %v1828, %v2016
  %v2018 = vpop.f32.mrf.mxu0
  %v2019 = vadd.f32 %v1828, %v2018
  %2020 = vmatmul.bf16.gmra.mxu0 %v1805
  %v2021 = vpop.f32.mrf.mxu0
  %v2022 = vadd.f32 %v1828, %v2021
  %v2023 = vpop.f32.mrf.mxu0
  %v2024 = vadd.f32 %v1828, %v2023
  %2025 = vmatmul.bf16.gmra.mxu0 %v1806
  %v2026 = vpop.f32.mrf.mxu0
  %v2027 = vadd.f32 %v1828, %v2026
  %v2028 = vpop.f32.mrf.mxu0
  %v2029 = vadd.f32 %v1828, %v2028
  %2030 = vmatmul.bf16.gmra.mxu0 %v1807
  %v2031 = vpop.f32.mrf.mxu0
  %v2032 = vadd.f32 %v1828, %v2031
  %v2033 = vpop.f32.mrf.mxu0
  %v2034 = vadd.f32 %v1828, %v2033
  %2035 = vmatmul.bf16.gmra.mxu0 %v1808
  %v2036 = vpop.f32.mrf.mxu0
  %v2037 = vadd.f32 %v1828, %v2036
  %v2038 = vpop.f32.mrf.mxu0
  %v2039 = vadd.f32 %v1828, %v2038
  %2040 = vmatmul.bf16.gmra.mxu0 %v1809
  %v2041 = vpop.f32.mrf.mxu0
  %v2042 = vadd.f32 %v1828, %v2041
  %v2043 = vpop.f32.mrf.mxu0
  %2044 = vdwg.mxu0
  %v2045 = vtanh.pop %v1887
  %v2046 = vtanh.pop %v1889
  %v2047 = vtanh.pop %v1892
  %v2048 = vtanh.pop %v1894
  %v2049 = vtanh.pop %v1897
  %v2050 = vtanh.pop %v1899
  %v2051 = vtanh.pop %v1902
  %v2052 = vtanh.pop %v1904
  %v2053 = vtanh.pop %v1907
  %v2054 = vtanh.pop %v1909
  %v2055 = vtanh.pop %v1912
  %v2056 = vtanh.pop %v1914
  %v2057 = vtanh.pop %v1917
  %v2058 = vtanh.pop %v1919
  %v2059 = vtanh.pop %v1922
  %v2060 = vtanh.pop %v1924
  %v2061 = vtanh.pop %v1927
  %v2062 = vtanh.pop %v1929
  %v2063 = vtanh.pop %v1932
  %v2064 = vtanh.pop %v1934
  %v2065 = vtanh.pop %v1937
  %v2066 = vtanh.pop %v1939
  %v2067 = vtanh.pop %v1942
  %v2068 = vtanh.pop %v1944
  %v2069 = vtanh.pop %v1947
  %v2070 = vtanh.pop %v1949
  %v2071 = vtanh.pop %v1952
  %v2072 = vtanh.pop %v1954
  %v2073 = vtanh.pop %v1957
  %v2074 = vtanh.pop %v1959
  %v2075 = vtanh.pop %v1962
  %v2076 = vtanh.pop %v1964
  %v2077 = vtanh.pop %v1967
  %v2078 = vtanh.pop %v1969
  %v2079 = vtanh.pop %v1972
  %v2080 = vtanh.pop %v1974
  %v2081 = vtanh.pop %v1977
  %v2082 = vtanh.pop %v1979
  %v2083 = vtanh.pop %v1982
  %v2084 = vtanh.pop %v1984
  %v2085 = vtanh.pop %v1987
  %v2086 = vtanh.pop %v1989
  %v2087 = vtanh.pop %v1992
  %v2088 = vtanh.pop %v1994
  %v2089 = vtanh.pop %v1997
  %v2090 = vtanh.pop %v1999
  %v2091 = vtanh.pop %v2002
  %v2092 = vtanh.pop %v2004
  %v2093 = vtanh.pop %v2007
  %v2094 = vtanh.pop %v2009
  %v2095 = vtanh.pop %v2012
  %v2096 = vtanh.pop %v2014
  %v2097 = vtanh.pop %v2017
  %v2098 = vtanh.pop %v2019
  %v2099 = vtanh.pop %v2022
  %v2100 = vtanh.pop %v2024
  %v2101 = vtanh.pop %v2027
  %v2102 = vtanh.pop %v2029
  %v2103 = vtanh.pop %v2032
  %v2104 = vtanh.pop %v2034
  %v2105 = vtanh.pop %v2037
  %v2106 = vtanh.pop %v2039
  %v2107 = vtanh.pop %v2042
  %v2108 = vpack.c.bf16 %v2046, %v2045
  %v2109 = vpack.c.bf16 %v2048, %v2047
  %v2110 = vpack.c.bf16 %v2050, %v2049
  %v2111 = vpack.c.bf16 %v2052, %v2051
  %v2112 = vpack.c.bf16 %v2054, %v2053
  %v2113 = vpack.c.bf16 %v2056, %v2055
  %v2114 = vpack.c.bf16 %v2058, %v2057
  %v2115 = vpack.c.bf16 %v2060, %v2059
  %v2116 = vpack.c.bf16 %v2062, %v2061
  %v2117 = vpack.c.bf16 %v2064, %v2063
  %v2118 = vpack.c.bf16 %v2066, %v2065
  %v2119 = vpack.c.bf16 %v2068, %v2067
  %v2120 = vpack.c.bf16 %v2070, %v2069
  %v2121 = vpack.c.bf16 %v2072, %v2071
  %v2122 = vpack.c.bf16 %v2074, %v2073
  %v2123 = vpack.c.bf16 %v2076, %v2075
  %v2124 = vpack.c.bf16 %v2078, %v2077
  %v2125 = vpack.c.bf16 %v2080, %v2079
  %v2126 = vpack.c.bf16 %v2082, %v2081
  %v2127 = vpack.c.bf16 %v2084, %v2083
  %v2128 = vpack.c.bf16 %v2086, %v2085
  %v2129 = vpack.c.bf16 %v2088, %v2087
  %v2130 = vpack.c.bf16 %v2090, %v2089
  %v2131 = vpack.c.bf16 %v2092, %v2091
  %v2132 = vpack.c.bf16 %v2094, %v2093
  %v2133 = vpack.c.bf16 %v2096, %v2095
  %v2134 = vpack.c.bf16 %v2098, %v2097
  %v2135 = vpack.c.bf16 %v2100, %v2099
  %v2136 = vpack.c.bf16 %v2102, %v2101
  %v2137 = vpack.c.bf16 %v2104, %v2103
  %v2138 = vpack.c.bf16 %v2106, %v2105
  %v2139 = vpack.c.bf16 %v2107, %v2107
  %s2140 = scalar_lea.vmem %s3, 320
  %v2141 = vld [vmem:[%s2140] sm:$0xf]
  %v2142 = vld [vmem:[%s2140 + $0x4] sm:$0xf]
  %v2143 = vld [vmem:[%s2140 + $0x8] sm:$0xf]
  %v2144 = vld [vmem:[%s2140 + $0xc] sm:$0xf]
  %v2145 = vld [vmem:[%s2140 + $0x10] sm:$0xf]
  %v2146 = vld [vmem:[%s2140 + $0x14] sm:$0xf]
  %v2147 = vld [vmem:[%s2140 + $0x18] sm:$0xf]
  %v2148 = vld [vmem:[%s2140 + $0x1c] sm:$0xf]
  %v2149 = vld [vmem:[%s2140 + $0x20] sm:$0xf]
  %v2150 = vld [vmem:[%s2140 + $0x24] sm:$0xf]
  %v2151 = vld [vmem:[%s2140 + $0x28] sm:$0xf]
  %v2152 = vld [vmem:[%s2140 + $0x2c] sm:$0xf]
  %v2153 = vld [vmem:[%s2140 + $0x30] sm:$0xf]
  %v2154 = vld [vmem:[%s2140 + $0x34] sm:$0xf]
  %v2155 = vld [vmem:[%s2140 + $0x38] sm:$0xf]
  %v2156 = vld [vmem:[%s2140 + $0x3c] sm:$0xf]
  %v2157 = vld [vmem:[%s4 + $0x5] sm:$0x1]
  %v2158 = vperm.slane %v2157, 0
  %v2175 = vunpack.c.l.b16 %v2141
  %v2176 = vunpack.c.l.b16 %v2142
  %v2177 = vunpack.c.l.b16 %v2143
  %v2178 = vunpack.c.l.b16 %v2144
  %v2179 = vunpack.c.l.b16 %v2145
  %v2180 = vunpack.c.l.b16 %v2146
  %v2181 = vunpack.c.l.b16 %v2147
  %v2182 = vunpack.c.l.b16 %v2148
  %v2183 = vunpack.c.l.b16 %v2149
  %v2184 = vunpack.c.l.b16 %v2150
  %v2185 = vunpack.c.l.b16 %v2151
  %v2186 = vunpack.c.l.b16 %v2152
  %v2187 = vunpack.c.l.b16 %v2153
  %v2188 = vunpack.c.l.b16 %v2154
  %v2189 = vunpack.c.l.b16 %v2155
  %v2190 = vunpack.c.l.b16 %v2156
  %v2191 = vpack.c.b16 %v2176, %v2175
  %v2192 = vpack.c.b16 %v2178, %v2177
  %v2193 = vpack.c.b16 %v2180, %v2179
  %v2194 = vpack.c.b16 %v2182, %v2181
  %v2195 = vpack.c.b16 %v2184, %v2183
  %v2196 = vpack.c.b16 %v2186, %v2185
  %v2197 = vpack.c.b16 %v2188, %v2187
  %v2198 = vpack.c.b16 %v2190, %v2189
  %2207 = vmatpush.bf16.msra.mxu0 %v2198
  %2208 = vmatpush.bf16.msra.mxu0 %v2197
  %2209 = vmatpush.bf16.msra.mxu0 %v2196
  %2210 = vmatpush.bf16.msra.mxu0 %v2195
  %2211 = vmatpush.bf16.msra.mxu0 %v2194
  %2212 = vmatpush.bf16.msra.mxu0 %v2193
  %2213 = vmatpush.bf16.msra.mxu0 %v2192
  %2214 = vmatpush.bf16.msra.mxu0 %v2191
  %2215 = vmatmul.bf16.gmra.mxu0 %v2108
  %v2216 = vpop.f32.mrf.mxu0
  %v2217 = vadd.f32 %v2158, %v2216
  %v2218 = vpop.f32.mrf.mxu0
  %v2219 = vadd.f32 %v2158, %v2218
  %2220 = vmatmul.bf16.gmra.mxu0 %v2109
  %v2221 = vpop.f32.mrf.mxu0
  %v2222 = vadd.f32 %v2158, %v2221
  %v2223 = vpop.f32.mrf.mxu0
  %v2224 = vadd.f32 %v2158, %v2223
  %2225 = vmatmul.bf16.gmra.mxu0 %v2110
  %v2226 = vpop.f32.mrf.mxu0
  %v2227 = vadd.f32 %v2158, %v2226
  %v2228 = vpop.f32.mrf.mxu0
  %v2229 = vadd.f32 %v2158, %v2228
  %2230 = vmatmul.bf16.gmra.mxu0 %v2111
  %v2231 = vpop.f32.mrf.mxu0
  %v2232 = vadd.f32 %v2158, %v2231
  %v2233 = vpop.f32.mrf.mxu0
  %v2234 = vadd.f32 %v2158, %v2233
  %2235 = vmatmul.bf16.gmra.mxu0 %v2112
  %v2236 = vpop.f32.mrf.mxu0
  %v2237 = vadd.f32 %v2158, %v2236
  %v2238 = vpop.f32.mrf.mxu0
  %v2239 = vadd.f32 %v2158, %v2238
  %2240 = vmatmul.bf16.gmra.mxu0 %v2113
  %v2241 = vpop.f32.mrf.mxu0
  %v2242 = vadd.f32 %v2158, %v2241
  %v2243 = vpop.f32.mrf.mxu0
  %v2244 = vadd.f32 %v2158, %v2243
  %2245 = vmatmul.bf16.gmra.mxu0 %v2114
  %v2246 = vpop.f32.mrf.mxu0
  %v2247 = vadd.f32 %v2158, %v2246
  %v2248 = vpop.f32.mrf.mxu0
  %v2249 = vadd.f32 %v2158, %v2248
  %2250 = vmatmul.bf16.gmra.mxu0 %v2115
  %v2251 = vpop.f32.mrf.mxu0
  %v2252 = vadd.f32 %v2158, %v2251
  %v2253 = vpop.f32.mrf.mxu0
  %v2254 = vadd.f32 %v2158, %v2253
  %2255 = vmatmul.bf16.gmra.mxu0 %v2116
  %v2256 = vpop.f32.mrf.mxu0
  %v2257 = vadd.f32 %v2158, %v2256
  %v2258 = vpop.f32.mrf.mxu0
  %v2259 = vadd.f32 %v2158, %v2258
  %2260 = vmatmul.bf16.gmra.mxu0 %v2117
  %v2261 = vpop.f32.mrf.mxu0
  %v2262 = vadd.f32 %v2158, %v2261
  %v2263 = vpop.f32.mrf.mxu0
  %v2264 = vadd.f32 %v2158, %v2263
  %2265 = vmatmul.bf16.gmra.mxu0 %v2118
  %v2266 = vpop.f32.mrf.mxu0
  %v2267 = vadd.f32 %v2158, %v2266
  %v2268 = vpop.f32.mrf.mxu0
  %v2269 = vadd.f32 %v2158, %v2268
  %2270 = vmatmul.bf16.gmra.mxu0 %v2119
  %v2271 = vpop.f32.mrf.mxu0
  %v2272 = vadd.f32 %v2158, %v2271
  %v2273 = vpop.f32.mrf.mxu0
  %v2274 = vadd.f32 %v2158, %v2273
  %2275 = vmatmul.bf16.gmra.mxu0 %v2120
  %v2276 = vpop.f32.mrf.mxu0
  %v2277 = vadd.f32 %v2158, %v2276
  %v2278 = vpop.f32.mrf.mxu0
  %v2279 = vadd.f32 %v2158, %v2278
  %2280 = vmatmul.bf16.gmra.mxu0 %v2121
  %v2281 = vpop.f32.mrf.mxu0
  %v2282 = vadd.f32 %v2158, %v2281
  %v2283 = vpop.f32.mrf.mxu0
  %v2284 = vadd.f32 %v2158, %v2283
  %2285 = vmatmul.bf16.gmra.mxu0 %v2122
  %v2286 = vpop.f32.mrf.mxu0
  %v2287 = vadd.f32 %v2158, %v2286
  %v2288 = vpop.f32.mrf.mxu0
  %v2289 = vadd.f32 %v2158, %v2288
  %2290 = vmatmul.bf16.gmra.mxu0 %v2123
  %v2291 = vpop.f32.mrf.mxu0
  %v2292 = vadd.f32 %v2158, %v2291
  %v2293 = vpop.f32.mrf.mxu0
  %v2294 = vadd.f32 %v2158, %v2293
  %2295 = vmatmul.bf16.gmra.mxu0 %v2124
  %v2296 = vpop.f32.mrf.mxu0
  %v2297 = vadd.f32 %v2158, %v2296
  %v2298 = vpop.f32.mrf.mxu0
  %v2299 = vadd.f32 %v2158, %v2298
  %2300 = vmatmul.bf16.gmra.mxu0 %v2125
  %v2301 = vpop.f32.mrf.mxu0
  %v2302 = vadd.f32 %v2158, %v2301
  %v2303 = vpop.f32.mrf.mxu0
  %v2304 = vadd.f32 %v2158, %v2303
  %2305 = vmatmul.bf16.gmra.mxu0 %v2126
  %v2306 = vpop.f32.mrf.mxu0
  %v2307 = vadd.f32 %v2158, %v2306
  %v2308 = vpop.f32.mrf.mxu0
  %v2309 = vadd.f32 %v2158, %v2308
  %2310 = vmatmul.bf16.gmra.mxu0 %v2127
  %v2311 = vpop.f32.mrf.mxu0
  %v2312 = vadd.f32 %v2158, %v2311
  %v2313 = vpop.f32.mrf.mxu0
  %v2314 = vadd.f32 %v2158, %v2313
  %2315 = vmatmul.bf16.gmra.mxu0 %v2128
  %v2316 = vpop.f32.mrf.mxu0
  %v2317 = vadd.f32 %v2158, %v2316
  %v2318 = vpop.f32.mrf.mxu0
  %v2319 = vadd.f32 %v2158, %v2318
  %2320 = vmatmul.bf16.gmra.mxu0 %v2129
  %v2321 = vpop.f32.mrf.mxu0
  %v2322 = vadd.f32 %v2158, %v2321
  %v2323 = vpop.f32.mrf.mxu0
  %v2324 = vadd.f32 %v2158, %v2323
  %2325 = vmatmul.bf16.gmra.mxu0 %v2130
  %v2326 = vpop.f32.mrf.mxu0
  %v2327 = vadd.f32 %v2158, %v2326
  %v2328 = vpop.f32.mrf.mxu0
  %v2329 = vadd.f32 %v2158, %v2328
  %2330 = vmatmul.bf16.gmra.mxu0 %v2131
  %v2331 = vpop.f32.mrf.mxu0
  %v2332 = vadd.f32 %v2158, %v2331
  %v2333 = vpop.f32.mrf.mxu0
  %v2334 = vadd.f32 %v2158, %v2333
  %2335 = vmatmul.bf16.gmra.mxu0 %v2132
  %v2336 = vpop.f32.mrf.mxu0
  %v2337 = vadd.f32 %v2158, %v2336
  %v2338 = vpop.f32.mrf.mxu0
  %v2339 = vadd.f32 %v2158, %v2338
  %2340 = vmatmul.bf16.gmra.mxu0 %v2133
  %v2341 = vpop.f32.mrf.mxu0
  %v2342 = vadd.f32 %v2158, %v2341
  %v2343 = vpop.f32.mrf.mxu0
  %v2344 = vadd.f32 %v2158, %v2343
  %2345 = vmatmul.bf16.gmra.mxu0 %v2134
  %v2346 = vpop.f32.mrf.mxu0
  %v2347 = vadd.f32 %v2158, %v2346
  %v2348 = vpop.f32.mrf.mxu0
  %v2349 = vadd.f32 %v2158, %v2348
  %2350 = vmatmul.bf16.gmra.mxu0 %v2135
  %v2351 = vpop.f32.mrf.mxu0
  %v2352 = vadd.f32 %v2158, %v2351
  %v2353 = vpop.f32.mrf.mxu0
  %v2354 = vadd.f32 %v2158, %v2353
  %2355 = vmatmul.bf16.gmra.mxu0 %v2136
  %v2356 = vpop.f32.mrf.mxu0
  %v2357 = vadd.f32 %v2158, %v2356
  %v2358 = vpop.f32.mrf.mxu0
  %v2359 = vadd.f32 %v2158, %v2358
  %2360 = vmatmul.bf16.gmra.mxu0 %v2137
  %v2361 = vpop.f32.mrf.mxu0
  %v2362 = vadd.f32 %v2158, %v2361
  %v2363 = vpop.f32.mrf.mxu0
  %v2364 = vadd.f32 %v2158, %v2363
  %2365 = vmatmul.bf16.gmra.mxu0 %v2138
  %v2366 = vpop.f32.mrf.mxu0
  %v2367 = vadd.f32 %v2158, %v2366
  %v2368 = vpop.f32.mrf.mxu0
  %v2369 = vadd.f32 %v2158, %v2368
  %2370 = vmatmul.bf16.gmra.mxu0 %v2139
  %v2371 = vpop.f32.mrf.mxu0
  %v2372 = vadd.f32 %v2158, %v2371
  %v2373 = vpop.f32.mrf.mxu0
  %2374 = vdwg.mxu0
  %v2375 = vtanh.pop %v2217
  %v2376 = vtanh.pop %v2219
  %v2377 = vtanh.pop %v2222
  %v2378 = vtanh.pop %v2224
  %v2379 = vtanh.pop %v2227
  %v2380 = vtanh.pop %v2229
  %v2381 = vtanh.pop %v2232
  %v2382 = vtanh.pop %v2234
  %v2383 = vtanh.pop %v2237
  %v2384 = vtanh.pop %v2239
  %v2385 = vtanh.pop %v2242
  %v2386 = vtanh.pop %v2244
  %v2387 = vtanh.pop %v2247
  %v2388 = vtanh.pop %v2249
  %v2389 = vtanh.pop %v2252
  %v2390 = vtanh.pop %v2254
  %v2391 = vtanh.pop %v2257
  %v2392 = vtanh.pop %v2259
  %v2393 = vtanh.pop %v2262
  %v2394 = vtanh.pop %v2264
  %v2395 = vtanh.pop %v2267
  %v2396 = vtanh.pop %v2269
  %v2397 = vtanh.pop %v2272
  %v2398 = vtanh.pop %v2274
  %v2399 = vtanh.pop %v2277
  %v2400 = vtanh.pop %v2279
  %v2401 = vtanh.pop %v2282
  %v2402 = vtanh.pop %v2284
  %v2403 = vtanh.pop %v2287
  %v2404 = vtanh.pop %v2289
  %v2405 = vtanh.pop %v2292
  %v2406 = vtanh.pop %v2294
  %v2407 = vtanh.pop %v2297
  %v2408 = vtanh.pop %v2299
  %v2409 = vtanh.pop %v2302
  %v2410 = vtanh.pop %v2304
  %v2411 = vtanh.pop %v2307
  %v2412 = vtanh.pop %v2309
  %v2413 = vtanh.pop %v2312
  %v2414 = vtanh.pop %v2314
  %v2415 = vtanh.pop %v2317
  %v2416 = vtanh.pop %v2319
  %v2417 = vtanh.pop %v2322
  %v2418 = vtanh.pop %v2324
  %v2419 = vtanh.pop %v2327
  %v2420 = vtanh.pop %v2329
  %v2421 = vtanh.pop %v2332
  %v2422 = vtanh.pop %v2334
  %v2423 = vtanh.pop %v2337
  %v2424 = vtanh.pop %v2339
  %v2425 = vtanh.pop %v2342
  %v2426 = vtanh.pop %v2344
  %v2427 = vtanh.pop %v2347
  %v2428 = vtanh.pop %v2349
  %v2429 = vtanh.pop %v2352
  %v2430 = vtanh.pop %v2354
  %v2431 = vtanh.pop %v2357
  %v2432 = vtanh.pop %v2359
  %v2433 = vtanh.pop %v2362
  %v2434 = vtanh.pop %v2364
  %v2435 = vtanh.pop %v2367
  %v2436 = vtanh.pop %v2369
  %v2437 = vtanh.pop %v2372
  %v2438 = vpack.c.bf16 %v2376, %v2375
  %v2439 = vpack.c.bf16 %v2378, %v2377
  %v2440 = vpack.c.bf16 %v2380, %v2379
  %v2441 = vpack.c.bf16 %v2382, %v2381
  %v2442 = vpack.c.bf16 %v2384, %v2383
  %v2443 = vpack.c.bf16 %v2386, %v2385
  %v2444 = vpack.c.bf16 %v2388, %v2387
  %v2445 = vpack.c.bf16 %v2390, %v2389
  %v2446 = vpack.c.bf16 %v2392, %v2391
  %v2447 = vpack.c.bf16 %v2394, %v2393
  %v2448 = vpack.c.bf16 %v2396, %v2395
  %v2449 = vpack.c.bf16 %v2398, %v2397
  %v2450 = vpack.c.bf16 %v2400, %v2399
  %v2451 = vpack.c.bf16 %v2402, %v2401
  %v2452 = vpack.c.bf16 %v2404, %v2403
  %v2453 = vpack.c.bf16 %v2406, %v2405
  %v2454 = vpack.c.bf16 %v2408, %v2407
  %v2455 = vpack.c.bf16 %v2410, %v2409
  %v2456 = vpack.c.bf16 %v2412, %v2411
  %v2457 = vpack.c.bf16 %v2414, %v2413
  %v2458 = vpack.c.bf16 %v2416, %v2415
  %v2459 = vpack.c.bf16 %v2418, %v2417
  %v2460 = vpack.c.bf16 %v2420, %v2419
  %v2461 = vpack.c.bf16 %v2422, %v2421
  %v2462 = vpack.c.bf16 %v2424, %v2423
  %v2463 = vpack.c.bf16 %v2426, %v2425
  %v2464 = vpack.c.bf16 %v2428, %v2427
  %v2465 = vpack.c.bf16 %v2430, %v2429
  %v2466 = vpack.c.bf16 %v2432, %v2431
  %v2467 = vpack.c.bf16 %v2434, %v2433
  %v2468 = vpack.c.bf16 %v2436, %v2435
  %v2469 = vpack.c.bf16 %v2437, %v2437
  %s2470 = scalar_lea.vmem %s3, 384
  %v2471 = vld [vmem:[%s2470] sm:$0xf]
  %v2472 = vld [vmem:[%s2470 + $0x4] sm:$0xf]
  %v2473 = vld [vmem:[%s2470 + $0x8] sm:$0xf]
  %v2474 = vld [vmem:[%s2470 + $0xc] sm:$0xf]
  %v2475 = vld [vmem:[%s2470 + $0x10] sm:$0xf]
  %v2476 = vld [vmem:[%s2470 + $0x14] sm:$0xf]
  %v2477 = vld [vmem:[%s2470 + $0x18] sm:$0xf]
  %v2478 = vld [vmem:[%s2470 + $0x1c] sm:$0xf]
  %v2479 = vld [vmem:[%s2470 + $0x20] sm:$0xf]
  %v2480 = vld [vmem:[%s2470 + $0x24] sm:$0xf]
  %v2481 = vld [vmem:[%s2470 + $0x28] sm:$0xf]
  %v2482 = vld [vmem:[%s2470 + $0x2c] sm:$0xf]
  %v2483 = vld [vmem:[%s2470 + $0x30] sm:$0xf]
  %v2484 = vld [vmem:[%s2470 + $0x34] sm:$0xf]
  %v2485 = vld [vmem:[%s2470 + $0x38] sm:$0xf]
  %v2486 = vld [vmem:[%s2470 + $0x3c] sm:$0xf]
  %v2487 = vld [vmem:[%s4 + $0x6] sm:$0x1]
  %v2488 = vperm.slane %v2487, 0
  %v2505 = vunpack.c.l.b16 %v2471
  %v2506 = vunpack.c.l.b16 %v2472
  %v2507 = vunpack.c.l.b16 %v2473
  %v2508 = vunpack.c.l.b16 %v2474
  %v2509 = vunpack.c.l.b16 %v2475
  %v2510 = vunpack.c.l.b16 %v2476
  %v2511 = vunpack.c.l.b16 %v2477
  %v2512 = vunpack.c.l.b16 %v2478
  %v2513 = vunpack.c.l.b16 %v2479
  %v2514 = vunpack.c.l.b16 %v2480
  %v2515 = vunpack.c.l.b16 %v2481
  %v2516 = vunpack.c.l.b16 %v2482
  %v2517 = vunpack.c.l.b16 %v2483
  %v2518 = vunpack.c.l.b16 %v2484
  %v2519 = vunpack.c.l.b16 %v2485
  %v2520 = vunpack.c.l.b16 %v2486
  %v2521 = vpack.c.b16 %v2506, %v2505
  %v2522 = vpack.c.b16 %v2508, %v2507
  %v2523 = vpack.c.b16 %v2510, %v2509
  %v2524 = vpack.c.b16 %v2512, %v2511
  %v2525 = vpack.c.b16 %v2514, %v2513
  %v2526 = vpack.c.b16 %v2516, %v2515
  %v2527 = vpack.c.b16 %v2518, %v2517
  %v2528 = vpack.c.b16 %v2520, %v2519
  %2537 = vmatpush.bf16.msra.mxu0 %v2528
  %2538 = vmatpush.bf16.msra.mxu0 %v2527
  %2539 = vmatpush.bf16.msra.mxu0 %v2526
  %2540 = vmatpush.bf16.msra.mxu0 %v2525
  %2541 = vmatpush.bf16.msra.mxu0 %v2524
  %2542 = vmatpush.bf16.msra.mxu0 %v2523
  %2543 = vmatpush.bf16.msra.mxu0 %v2522
  %2544 = vmatpush.bf16.msra.mxu0 %v2521
  %2545 = vmatmul.bf16.gmra.mxu0 %v2438
  %v2546 = vpop.f32.mrf.mxu0
  %v2547 = vadd.f32 %v2488, %v2546
  %v2548 = vpop.f32.mrf.mxu0
  %v2549 = vadd.f32 %v2488, %v2548
  %2550 = vmatmul.bf16.gmra.mxu0 %v2439
  %v2551 = vpop.f32.mrf.mxu0
  %v2552 = vadd.f32 %v2488, %v2551
  %v2553 = vpop.f32.mrf.mxu0
  %v2554 = vadd.f32 %v2488, %v2553
  %2555 = vmatmul.bf16.gmra.mxu0 %v2440
  %v2556 = vpop.f32.mrf.mxu0
  %v2557 = vadd.f32 %v2488, %v2556
  %v2558 = vpop.f32.mrf.mxu0
  %v2559 = vadd.f32 %v2488, %v2558
  %2560 = vmatmul.bf16.gmra.mxu0 %v2441
  %v2561 = vpop.f32.mrf.mxu0
  %v2562 = vadd.f32 %v2488, %v2561
  %v2563 = vpop.f32.mrf.mxu0
  %v2564 = vadd.f32 %v2488, %v2563
  %2565 = vmatmul.bf16.gmra.mxu0 %v2442
  %v2566 = vpop.f32.mrf.mxu0
  %v2567 = vadd.f32 %v2488, %v2566
  %v2568 = vpop.f32.mrf.mxu0
  %v2569 = vadd.f32 %v2488, %v2568
  %2570 = vmatmul.bf16.gmra.mxu0 %v2443
  %v2571 = vpop.f32.mrf.mxu0
  %v2572 = vadd.f32 %v2488, %v2571
  %v2573 = vpop.f32.mrf.mxu0
  %v2574 = vadd.f32 %v2488, %v2573
  %2575 = vmatmul.bf16.gmra.mxu0 %v2444
  %v2576 = vpop.f32.mrf.mxu0
  %v2577 = vadd.f32 %v2488, %v2576
  %v2578 = vpop.f32.mrf.mxu0
  %v2579 = vadd.f32 %v2488, %v2578
  %2580 = vmatmul.bf16.gmra.mxu0 %v2445
  %v2581 = vpop.f32.mrf.mxu0
  %v2582 = vadd.f32 %v2488, %v2581
  %v2583 = vpop.f32.mrf.mxu0
  %v2584 = vadd.f32 %v2488, %v2583
  %2585 = vmatmul.bf16.gmra.mxu0 %v2446
  %v2586 = vpop.f32.mrf.mxu0
  %v2587 = vadd.f32 %v2488, %v2586
  %v2588 = vpop.f32.mrf.mxu0
  %v2589 = vadd.f32 %v2488, %v2588
  %2590 = vmatmul.bf16.gmra.mxu0 %v2447
  %v2591 = vpop.f32.mrf.mxu0
  %v2592 = vadd.f32 %v2488, %v2591
  %v2593 = vpop.f32.mrf.mxu0
  %v2594 = vadd.f32 %v2488, %v2593
  %2595 = vmatmul.bf16.gmra.mxu0 %v2448
  %v2596 = vpop.f32.mrf.mxu0
  %v2597 = vadd.f32 %v2488, %v2596
  %v2598 = vpop.f32.mrf.mxu0
  %v2599 = vadd.f32 %v2488, %v2598
  %2600 = vmatmul.bf16.gmra.mxu0 %v2449
  %v2601 = vpop.f32.mrf.mxu0
  %v2602 = vadd.f32 %v2488, %v2601
  %v2603 = vpop.f32.mrf.mxu0
  %v2604 = vadd.f32 %v2488, %v2603
  %2605 = vmatmul.bf16.gmra.mxu0 %v2450
  %v2606 = vpop.f32.mrf.mxu0
  %v2607 = vadd.f32 %v2488, %v2606
  %v2608 = vpop.f32.mrf.mxu0
  %v2609 = vadd.f32 %v2488, %v2608
  %2610 = vmatmul.bf16.gmra.mxu0 %v2451
  %v2611 = vpop.f32.mrf.mxu0
  %v2612 = vadd.f32 %v2488, %v2611
  %v2613 = vpop.f32.mrf.mxu0
  %v2614 = vadd.f32 %v2488, %v2613
  %2615 = vmatmul.bf16.gmra.mxu0 %v2452
  %v2616 = vpop.f32.mrf.mxu0
  %v2617 = vadd.f32 %v2488, %v2616
  %v2618 = vpop.f32.mrf.mxu0
  %v2619 = vadd.f32 %v2488, %v2618
  %2620 = vmatmul.bf16.gmra.mxu0 %v2453
  %v2621 = vpop.f32.mrf.mxu0
  %v2622 = vadd.f32 %v2488, %v2621
  %v2623 = vpop.f32.mrf.mxu0
  %v2624 = vadd.f32 %v2488, %v2623
  %2625 = vmatmul.bf16.gmra.mxu0 %v2454
  %v2626 = vpop.f32.mrf.mxu0
  %v2627 = vadd.f32 %v2488, %v2626
  %v2628 = vpop.f32.mrf.mxu0
  %v2629 = vadd.f32 %v2488, %v2628
  %2630 = vmatmul.bf16.gmra.mxu0 %v2455
  %v2631 = vpop.f32.mrf.mxu0
  %v2632 = vadd.f32 %v2488, %v2631
  %v2633 = vpop.f32.mrf.mxu0
  %v2634 = vadd.f32 %v2488, %v2633
  %2635 = vmatmul.bf16.gmra.mxu0 %v2456
  %v2636 = vpop.f32.mrf.mxu0
  %v2637 = vadd.f32 %v2488, %v2636
  %v2638 = vpop.f32.mrf.mxu0
  %v2639 = vadd.f32 %v2488, %v2638
  %2640 = vmatmul.bf16.gmra.mxu0 %v2457
  %v2641 = vpop.f32.mrf.mxu0
  %v2642 = vadd.f32 %v2488, %v2641
  %v2643 = vpop.f32.mrf.mxu0
  %v2644 = vadd.f32 %v2488, %v2643
  %2645 = vmatmul.bf16.gmra.mxu0 %v2458
  %v2646 = vpop.f32.mrf.mxu0
  %v2647 = vadd.f32 %v2488, %v2646
  %v2648 = vpop.f32.mrf.mxu0
  %v2649 = vadd.f32 %v2488, %v2648
  %2650 = vmatmul.bf16.gmra.mxu0 %v2459
  %v2651 = vpop.f32.mrf.mxu0
  %v2652 = vadd.f32 %v2488, %v2651
  %v2653 = vpop.f32.mrf.mxu0
  %v2654 = vadd.f32 %v2488, %v2653
  %2655 = vmatmul.bf16.gmra.mxu0 %v2460
  %v2656 = vpop.f32.mrf.mxu0
  %v2657 = vadd.f32 %v2488, %v2656
  %v2658 = vpop.f32.mrf.mxu0
  %v2659 = vadd.f32 %v2488, %v2658
  %2660 = vmatmul.bf16.gmra.mxu0 %v2461
  %v2661 = vpop.f32.mrf.mxu0
  %v2662 = vadd.f32 %v2488, %v2661
  %v2663 = vpop.f32.mrf.mxu0
  %v2664 = vadd.f32 %v2488, %v2663
  %2665 = vmatmul.bf16.gmra.mxu0 %v2462
  %v2666 = vpop.f32.mrf.mxu0
  %v2667 = vadd.f32 %v2488, %v2666
  %v2668 = vpop.f32.mrf.mxu0
  %v2669 = vadd.f32 %v2488, %v2668
  %2670 = vmatmul.bf16.gmra.mxu0 %v2463
  %v2671 = vpop.f32.mrf.mxu0
  %v2672 = vadd.f32 %v2488, %v2671
  %v2673 = vpop.f32.mrf.mxu0
  %v2674 = vadd.f32 %v2488, %v2673
  %2675 = vmatmul.bf16.gmra.mxu0 %v2464
  %v2676 = vpop.f32.mrf.mxu0
  %v2677 = vadd.f32 %v2488, %v2676
  %v2678 = vpop.f32.mrf.mxu0
  %v2679 = vadd.f32 %v2488, %v2678
  %2680 = vmatmul.bf16.gmra.mxu0 %v2465
  %v2681 = vpop.f32.mrf.mxu0
  %v2682 = vadd.f32 %v2488, %v2681
  %v2683 = vpop.f32.mrf.mxu0
  %v2684 = vadd.f32 %v2488, %v2683
  %2685 = vmatmul.bf16.gmra.mxu0 %v2466
  %v2686 = vpop.f32.mrf.mxu0
  %v2687 = vadd.f32 %v2488, %v2686
  %v2688 = vpop.f32.mrf.mxu0
  %v2689 = vadd.f32 %v2488, %v2688
  %2690 = vmatmul.bf16.gmra.mxu0 %v2467
  %v2691 = vpop.f32.mrf.mxu0
  %v2692 = vadd.f32 %v2488, %v2691
  %v2693 = vpop.f32.mrf.mxu0
  %v2694 = vadd.f32 %v2488, %v2693
  %2695 = vmatmul.bf16.gmra.mxu0 %v2468
  %v2696 = vpop.f32.mrf.mxu0
  %v2697 = vadd.f32 %v2488, %v2696
  %v2698 = vpop.f32.mrf.mxu0
  %v2699 = vadd.f32 %v2488, %v2698
  %2700 = vmatmul.bf16.gmra.mxu0 %v2469
  %v2701 = vpop.f32.mrf.mxu0
  %v2702 = vadd.f32 %v2488, %v2701
  %v2703 = vpop.f32.mrf.mxu0
  %2704 = vdwg.mxu0
  %v2705 = vtanh.pop %v2547
  %v2706 = vtanh.pop %v2549
  %v2707 = vtanh.pop %v2552
  %v2708 = vtanh.pop %v2554
  %v2709 = vtanh.pop %v2557
  %v2710 = vtanh.pop %v2559
  %v2711 = vtanh.pop %v2562
  %v2712 = vtanh.pop %v2564
  %v2713 = vtanh.pop %v2567
  %v2714 = vtanh.pop %v2569
  %v2715 = vtanh.pop %v2572
  %v2716 = vtanh.pop %v2574
  %v2717 = vtanh.pop %v2577
  %v2718 = vtanh.pop %v2579
  %v2719 = vtanh.pop %v2582
  %v2720 = vtanh.pop %v2584
  %v2721 = vtanh.pop %v2587
  %v2722 = vtanh.pop %v2589
  %v2723 = vtanh.pop %v2592
  %v2724 = vtanh.pop %v2594
  %v2725 = vtanh.pop %v2597
  %v2726 = vtanh.pop %v2599
  %v2727 = vtanh.pop %v2602
  %v2728 = vtanh.pop %v2604
  %v2729 = vtanh.pop %v2607
  %v2730 = vtanh.pop %v2609
  %v2731 = vtanh.pop %v2612
  %v2732 = vtanh.pop %v2614
  %v2733 = vtanh.pop %v2617
  %v2734 = vtanh.pop %v2619
  %v2735 = vtanh.pop %v2622
  %v2736 = vtanh.pop %v2624
  %v2737 = vtanh.pop %v2627
  %v2738 = vtanh.pop %v2629
  %v2739 = vtanh.pop %v2632
  %v2740 = vtanh.pop %v2634
  %v2741 = vtanh.pop %v2637
  %v2742 = vtanh.pop %v2639
  %v2743 = vtanh.pop %v2642
  %v2744 = vtanh.pop %v2644
  %v2745 = vtanh.pop %v2647
  %v2746 = vtanh.pop %v2649
  %v2747 = vtanh.pop %v2652
  %v2748 = vtanh.pop %v2654
  %v2749 = vtanh.pop %v2657
  %v2750 = vtanh.pop %v2659
  %v2751 = vtanh.pop %v2662
  %v2752 = vtanh.pop %v2664
  %v2753 = vtanh.pop %v2667
  %v2754 = vtanh.pop %v2669
  %v2755 = vtanh.pop %v2672
  %v2756 = vtanh.pop %v2674
  %v2757 = vtanh.pop %v2677
  %v2758 = vtanh.pop %v2679
  %v2759 = vtanh.pop %v2682
  %v2760 = vtanh.pop %v2684
  %v2761 = vtanh.pop %v2687
  %v2762 = vtanh.pop %v2689
  %v2763 = vtanh.pop %v2692
  %v2764 = vtanh.pop %v2694
  %v2765 = vtanh.pop %v2697
  %v2766 = vtanh.pop %v2699
  %v2767 = vtanh.pop %v2702
  %v2768 = vpack.c.bf16 %v2706, %v2705
  %v2769 = vpack.c.bf16 %v2708, %v2707
  %v2770 = vpack.c.bf16 %v2710, %v2709
  %v2771 = vpack.c.bf16 %v2712, %v2711
  %v2772 = vpack.c.bf16 %v2714, %v2713
  %v2773 = vpack.c.bf16 %v2716, %v2715
  %v2774 = vpack.c.bf16 %v2718, %v2717
  %v2775 = vpack.c.bf16 %v2720, %v2719
  %v2776 = vpack.c.bf16 %v2722, %v2721
  %v2777 = vpack.c.bf16 %v2724, %v2723
  %v2778 = vpack.c.bf16 %v2726, %v2725
  %v2779 = vpack.c.bf16 %v2728, %v2727
  %v2780 = vpack.c.bf16 %v2730, %v2729
  %v2781 = vpack.c.bf16 %v2732, %v2731
  %v2782 = vpack.c.bf16 %v2734, %v2733
  %v2783 = vpack.c.bf16 %v2736, %v2735
  %v2784 = vpack.c.bf16 %v2738, %v2737
  %v2785 = vpack.c.bf16 %v2740, %v2739
  %v2786 = vpack.c.bf16 %v2742, %v2741
  %v2787 = vpack.c.bf16 %v2744, %v2743
  %v2788 = vpack.c.bf16 %v2746, %v2745
  %v2789 = vpack.c.bf16 %v2748, %v2747
  %v2790 = vpack.c.bf16 %v2750, %v2749
  %v2791 = vpack.c.bf16 %v2752, %v2751
  %v2792 = vpack.c.bf16 %v2754, %v2753
  %v2793 = vpack.c.bf16 %v2756, %v2755
  %v2794 = vpack.c.bf16 %v2758, %v2757
  %v2795 = vpack.c.bf16 %v2760, %v2759
  %v2796 = vpack.c.bf16 %v2762, %v2761
  %v2797 = vpack.c.bf16 %v2764, %v2763
  %v2798 = vpack.c.bf16 %v2766, %v2765
  %v2799 = vpack.c.bf16 %v2767, %v2767
  %v2800 = vld [vmem:[%s5] sm:$0xf]
  %v2801 = vld [vmem:[%s5 + $0x4] sm:$0xf]
  %v2802 = vld [vmem:[%s5 + $0x8] sm:$0xf]
  %v2803 = vld [vmem:[%s5 + $0xc] sm:$0xf]
  %v2804 = vld [vmem:[%s5 + $0x10] sm:$0xf]
  %v2805 = vld [vmem:[%s5 + $0x14] sm:$0xf]
  %v2806 = vld [vmem:[%s5 + $0x18] sm:$0xf]
  %v2807 = vld [vmem:[%s5 + $0x1c] sm:$0xf]
  %v2808 = vld [vmem:[%s5 + $0x20] sm:$0xf]
  %v2809 = vld [vmem:[%s5 + $0x24] sm:$0xf]
  %v2810 = vld [vmem:[%s5 + $0x28] sm:$0xf]
  %v2811 = vld [vmem:[%s5 + $0x2c] sm:$0xf]
  %v2812 = vld [vmem:[%s5 + $0x30] sm:$0xf]
  %v2813 = vld [vmem:[%s5 + $0x34] sm:$0xf]
  %v2814 = vld [vmem:[%s5 + $0x38] sm:$0xf]
  %v2815 = vld [vmem:[%s5 + $0x3c] sm:$0xf]
  %v2816 = vld [vmem:[%s6] sm:$0x1]
  %v2818 = vperm.slane %v2816, 0
  %v2836 = vunpack.c.l.b16 %v2800
  %v2837 = vunpack.c.l.b16 %v2801
  %v2838 = vunpack.c.l.b16 %v2802
  %v2839 = vunpack.c.l.b16 %v2803
  %v2840 = vunpack.c.l.b16 %v2804
  %v2841 = vunpack.c.l.b16 %v2805
  %v2842 = vunpack.c.l.b16 %v2806
  %v2843 = vunpack.c.l.b16 %v2807
  %v2844 = vunpack.c.l.b16 %v2808
  %v2845 = vunpack.c.l.b16 %v2809
  %v2846 = vunpack.c.l.b16 %v2810
  %v2847 = vunpack.c.l.b16 %v2811
  %v2848 = vunpack.c.l.b16 %v2812
  %v2849 = vunpack.c.l.b16 %v2813
  %v2850 = vunpack.c.l.b16 %v2814
  %v2851 = vunpack.c.l.b16 %v2815
  %v2852 = vpack.c.b16 %v2837, %v2836
  %v2853 = vpack.c.b16 %v2839, %v2838
  %v2854 = vpack.c.b16 %v2841, %v2840
  %v2855 = vpack.c.b16 %v2843, %v2842
  %v2856 = vpack.c.b16 %v2845, %v2844
  %v2857 = vpack.c.b16 %v2847, %v2846
  %v2858 = vpack.c.b16 %v2849, %v2848
  %v2859 = vpack.c.b16 %v2851, %v2850
  %2868 = vmatpush.bf16.msra.mxu0 %v2859
  %2869 = vmatpush.bf16.msra.mxu0 %v2858
  %2870 = vmatpush.bf16.msra.mxu0 %v2857
  %2871 = vmatpush.bf16.msra.mxu0 %v2856
  %2872 = vmatpush.bf16.msra.mxu0 %v2855
  %2873 = vmatpush.bf16.msra.mxu0 %v2854
  %2874 = vmatpush.bf16.msra.mxu0 %v2853
  %2875 = vmatpush.bf16.msra.mxu0 %v2852
  %2876 = vmatmul.bf16.gmra.mxu0 %v2768
  %v2877 = vpop.f32.mrf.mxu0
  %v2878 = vadd.f32 %v2818, %v2877
  %v2879 = vpop.f32.mrf.mxu0
  %v2880 = vadd.f32 %v2818, %v2879
  %2881 = vmatmul.bf16.gmra.mxu0 %v2769
  %v2882 = vpop.f32.mrf.mxu0
  %v2883 = vadd.f32 %v2818, %v2882
  %v2884 = vpop.f32.mrf.mxu0
  %v2885 = vadd.f32 %v2818, %v2884
  %2886 = vmatmul.bf16.gmra.mxu0 %v2770
  %v2887 = vpop.f32.mrf.mxu0
  %v2888 = vadd.f32 %v2818, %v2887
  %v2889 = vpop.f32.mrf.mxu0
  %v2890 = vadd.f32 %v2818, %v2889
  %2891 = vmatmul.bf16.gmra.mxu0 %v2771
  %v2892 = vpop.f32.mrf.mxu0
  %v2893 = vadd.f32 %v2818, %v2892
  %v2894 = vpop.f32.mrf.mxu0
  %v2895 = vadd.f32 %v2818, %v2894
  %2896 = vmatmul.bf16.gmra.mxu0 %v2772
  %v2897 = vpop.f32.mrf.mxu0
  %v2898 = vadd.f32 %v2818, %v2897
  %v2899 = vpop.f32.mrf.mxu0
  %v2900 = vadd.f32 %v2818, %v2899
  %2901 = vmatmul.bf16.gmra.mxu0 %v2773
  %v2902 = vpop.f32.mrf.mxu0
  %v2903 = vadd.f32 %v2818, %v2902
  %v2904 = vpop.f32.mrf.mxu0
  %v2905 = vadd.f32 %v2818, %v2904
  %2906 = vmatmul.bf16.gmra.mxu0 %v2774
  %v2907 = vpop.f32.mrf.mxu0
  %v2908 = vadd.f32 %v2818, %v2907
  %v2909 = vpop.f32.mrf.mxu0
  %v2910 = vadd.f32 %v2818, %v2909
  %2911 = vmatmul.bf16.gmra.mxu0 %v2775
  %v2912 = vpop.f32.mrf.mxu0
  %v2913 = vadd.f32 %v2818, %v2912
  %v2914 = vpop.f32.mrf.mxu0
  %v2915 = vadd.f32 %v2818, %v2914
  %2916 = vmatmul.bf16.gmra.mxu0 %v2776
  %v2917 = vpop.f32.mrf.mxu0
  %v2918 = vadd.f32 %v2818, %v2917
  %v2919 = vpop.f32.mrf.mxu0
  %v2920 = vadd.f32 %v2818, %v2919
  %2921 = vmatmul.bf16.gmra.mxu0 %v2777
  %v2922 = vpop.f32.mrf.mxu0
  %v2923 = vadd.f32 %v2818, %v2922
  %v2924 = vpop.f32.mrf.mxu0
  %v2925 = vadd.f32 %v2818, %v2924
  %2926 = vmatmul.bf16.gmra.mxu0 %v2778
  %v2927 = vpop.f32.mrf.mxu0
  %v2928 = vadd.f32 %v2818, %v2927
  %v2929 = vpop.f32.mrf.mxu0
  %v2930 = vadd.f32 %v2818, %v2929
  %2931 = vmatmul.bf16.gmra.mxu0 %v2779
  %v2932 = vpop.f32.mrf.mxu0
  %v2933 = vadd.f32 %v2818, %v2932
  %v2934 = vpop.f32.mrf.mxu0
  %v2935 = vadd.f32 %v2818, %v2934
  %2936 = vmatmul.bf16.gmra.mxu0 %v2780
  %v2937 = vpop.f32.mrf.mxu0
  %v2938 = vadd.f32 %v2818, %v2937
  %v2939 = vpop.f32.mrf.mxu0
  %v2940 = vadd.f32 %v2818, %v2939
  %2941 = vmatmul.bf16.gmra.mxu0 %v2781
  %v2942 = vpop.f32.mrf.mxu0
  %v2943 = vadd.f32 %v2818, %v2942
  %v2944 = vpop.f32.mrf.mxu0
  %v2945 = vadd.f32 %v2818, %v2944
  %2946 = vmatmul.bf16.gmra.mxu0 %v2782
  %v2947 = vpop.f32.mrf.mxu0
  %v2948 = vadd.f32 %v2818, %v2947
  %v2949 = vpop.f32.mrf.mxu0
  %v2950 = vadd.f32 %v2818, %v2949
  %2951 = vmatmul.bf16.gmra.mxu0 %v2783
  %v2952 = vpop.f32.mrf.mxu0
  %v2953 = vadd.f32 %v2818, %v2952
  %v2954 = vpop.f32.mrf.mxu0
  %v2955 = vadd.f32 %v2818, %v2954
  %2956 = vmatmul.bf16.gmra.mxu0 %v2784
  %v2957 = vpop.f32.mrf.mxu0
  %v2958 = vadd.f32 %v2818, %v2957
  %v2959 = vpop.f32.mrf.mxu0
  %v2960 = vadd.f32 %v2818, %v2959
  %2961 = vmatmul.bf16.gmra.mxu0 %v2785
  %v2962 = vpop.f32.mrf.mxu0
  %v2963 = vadd.f32 %v2818, %v2962
  %v2964 = vpop.f32.mrf.mxu0
  %v2965 = vadd.f32 %v2818, %v2964
  %2966 = vmatmul.bf16.gmra.mxu0 %v2786
  %v2967 = vpop.f32.mrf.mxu0
  %v2968 = vadd.f32 %v2818, %v2967
  %v2969 = vpop.f32.mrf.mxu0
  %v2970 = vadd.f32 %v2818, %v2969
  %2971 = vmatmul.bf16.gmra.mxu0 %v2787
  %v2972 = vpop.f32.mrf.mxu0
  %v2973 = vadd.f32 %v2818, %v2972
  %v2974 = vpop.f32.mrf.mxu0
  %v2975 = vadd.f32 %v2818, %v2974
  %2976 = vmatmul.bf16.gmra.mxu0 %v2788
  %v2977 = vpop.f32.mrf.mxu0
  %v2978 = vadd.f32 %v2818, %v2977
  %v2979 = vpop.f32.mrf.mxu0
  %v2980 = vadd.f32 %v2818, %v2979
  %2981 = vmatmul.bf16.gmra.mxu0 %v2789
  %v2982 = vpop.f32.mrf.mxu0
  %v2983 = vadd.f32 %v2818, %v2982
  %v2984 = vpop.f32.mrf.mxu0
  %v2985 = vadd.f32 %v2818, %v2984
  %2986 = vmatmul.bf16.gmra.mxu0 %v2790
  %v2987 = vpop.f32.mrf.mxu0
  %v2988 = vadd.f32 %v2818, %v2987
  %v2989 = vpop.f32.mrf.mxu0
  %v2990 = vadd.f32 %v2818, %v2989
  %2991 = vmatmul.bf16.gmra.mxu0 %v2791
  %v2992 = vpop.f32.mrf.mxu0
  %v2993 = vadd.f32 %v2818, %v2992
  %v2994 = vpop.f32.mrf.mxu0
  %v2995 = vadd.f32 %v2818, %v2994
  %2996 = vmatmul.bf16.gmra.mxu0 %v2792
  %v2997 = vpop.f32.mrf.mxu0
  %v2998 = vadd.f32 %v2818, %v2997
  %v2999 = vpop.f32.mrf.mxu0
  %v3000 = vadd.f32 %v2818, %v2999
  %3001 = vmatmul.bf16.gmra.mxu0 %v2793
  %v3002 = vpop.f32.mrf.mxu0
  %v3003 = vadd.f32 %v2818, %v3002
  %v3004 = vpop.f32.mrf.mxu0
  %v3005 = vadd.f32 %v2818, %v3004
  %3006 = vmatmul.bf16.gmra.mxu0 %v2794
  %v3007 = vpop.f32.mrf.mxu0
  %v3008 = vadd.f32 %v2818, %v3007
  %v3009 = vpop.f32.mrf.mxu0
  %v3010 = vadd.f32 %v2818, %v3009
  %3011 = vmatmul.bf16.gmra.mxu0 %v2795
  %v3012 = vpop.f32.mrf.mxu0
  %v3013 = vadd.f32 %v2818, %v3012
  %v3014 = vpop.f32.mrf.mxu0
  %v3015 = vadd.f32 %v2818, %v3014
  %3016 = vmatmul.bf16.gmra.mxu0 %v2796
  %v3017 = vpop.f32.mrf.mxu0
  %v3018 = vadd.f32 %v2818, %v3017
  %v3019 = vpop.f32.mrf.mxu0
  %v3020 = vadd.f32 %v2818, %v3019
  %3021 = vmatmul.bf16.gmra.mxu0 %v2797
  %v3022 = vpop.f32.mrf.mxu0
  %v3023 = vadd.f32 %v2818, %v3022
  %v3024 = vpop.f32.mrf.mxu0
  %v3025 = vadd.f32 %v2818, %v3024
  %3026 = vmatmul.bf16.gmra.mxu0 %v2798
  %v3027 = vpop.f32.mrf.mxu0
  %v3028 = vadd.f32 %v2818, %v3027
  %v3029 = vpop.f32.mrf.mxu0
  %v3030 = vadd.f32 %v2818, %v3029
  %3031 = vmatmul.bf16.gmra.mxu0 %v2799
  %v3032 = vpop.f32.mrf.mxu0
  %v3033 = vadd.f32 %v2818, %v3032
  %v3034 = vpop.f32.mrf.mxu0
  %3035 = vdwg.mxu0
  %3036 = vst.msk [vmem:[%s7] sm:$0xff] %vm127, %v2878
  %3037 = vst.msk [vmem:[%s7 + $0x8] sm:$0xff] %vm127, %v2880
  %3038 = vst.msk [vmem:[%s7 + $0x10] sm:$0xff] %vm127, %v2883
  %3039 = vst.msk [vmem:[%s7 + $0x18] sm:$0xff] %vm127, %v2885
  %3040 = vst.msk [vmem:[%s7 + $0x20] sm:$0xff] %vm127, %v2888
  %3041 = vst.msk [vmem:[%s7 + $0x28] sm:$0xff] %vm127, %v2890
  %3042 = vst.msk [vmem:[%s7 + $0x30] sm:$0xff] %vm127, %v2893
  %3043 = vst.msk [vmem:[%s7 + $0x38] sm:$0xff] %vm127, %v2895
  %3044 = vst.msk [vmem:[%s7 + $0x40] sm:$0xff] %vm127, %v2898
  %3045 = vst.msk [vmem:[%s7 + $0x48] sm:$0xff] %vm127, %v2900
  %3046 = vst.msk [vmem:[%s7 + $0x50] sm:$0xff] %vm127, %v2903
  %3047 = vst.msk [vmem:[%s7 + $0x58] sm:$0xff] %vm127, %v2905
  %3048 = vst.msk [vmem:[%s7 + $0x60] sm:$0xff] %vm127, %v2908
  %3049 = vst.msk [vmem:[%s7 + $0x68] sm:$0xff] %vm127, %v2910
  %3050 = vst.msk [vmem:[%s7 + $0x70] sm:$0xff] %vm127, %v2913
  %3051 = vst.msk [vmem:[%s7 + $0x78] sm:$0xff] %vm127, %v2915
  %3052 = vst.msk [vmem:[%s7 + $0x80] sm:$0xff] %vm127, %v2918
  %3053 = vst.msk [vmem:[%s7 + $0x88] sm:$0xff] %vm127, %v2920
  %3054 = vst.msk [vmem:[%s7 + $0x90] sm:$0xff] %vm127, %v2923
  %3055 = vst.msk [vmem:[%s7 + $0x98] sm:$0xff] %vm127, %v2925
  %3056 = vst.msk [vmem:[%s7 + $0xa0] sm:$0xff] %vm127, %v2928
  %3057 = vst.msk [vmem:[%s7 + $0xa8] sm:$0xff] %vm127, %v2930
  %3058 = vst.msk [vmem:[%s7 + $0xb0] sm:$0xff] %vm127, %v2933
  %3059 = vst.msk [vmem:[%s7 + $0xb8] sm:$0xff] %vm127, %v2935
  %3060 = vst.msk [vmem:[%s7 + $0xc0] sm:$0xff] %vm127, %v2938
  %3061 = vst.msk [vmem:[%s7 + $0xc8] sm:$0xff] %vm127, %v2940
  %3062 = vst.msk [vmem:[%s7 + $0xd0] sm:$0xff] %vm127, %v2943
  %3063 = vst.msk [vmem:[%s7 + $0xd8] sm:$0xff] %vm127, %v2945
  %3064 = vst.msk [vmem:[%s7 + $0xe0] sm:$0xff] %vm127, %v2948
  %3065 = vst.msk [vmem:[%s7 + $0xe8] sm:$0xff] %vm127, %v2950
  %3066 = vst.msk [vmem:[%s7 + $0xf0] sm:$0xff] %vm127, %v2953
  %3067 = vst.msk [vmem:[%s7 + $0xf8] sm:$0xff] %vm127, %v2955
  %3068 = vst.msk [vmem:[%s7 + $0x100] sm:$0xff] %vm127, %v2958
  %3069 = vst.msk [vmem:[%s7 + $0x108] sm:$0xff] %vm127, %v2960
  %3070 = vst.msk [vmem:[%s7 + $0x110] sm:$0xff] %vm127, %v2963
  %3071 = vst.msk [vmem:[%s7 + $0x118] sm:$0xff] %vm127, %v2965
  %3072 = vst.msk [vmem:[%s7 + $0x120] sm:$0xff] %vm127, %v2968
  %3073 = vst.msk [vmem:[%s7 + $0x128] sm:$0xff] %vm127, %v2970
  %3074 = vst.msk [vmem:[%s7 + $0x130] sm:$0xff] %vm127, %v2973
  %3075 = vst.msk [vmem:[%s7 + $0x138] sm:$0xff] %vm127, %v2975
  %3076 = vst.msk [vmem:[%s7 + $0x140] sm:$0xff] %vm127, %v2978
  %3077 = vst.msk [vmem:[%s7 + $0x148] sm:$0xff] %vm127, %v2980
  %3078 = vst.msk [vmem:[%s7 + $0x150] sm:$0xff] %vm127, %v2983
  %3079 = vst.msk [vmem:[%s7 + $0x158] sm:$0xff] %vm127, %v2985
  %3080 = vst.msk [vmem:[%s7 + $0x160] sm:$0xff] %vm127, %v2988
  %3081 = vst.msk [vmem:[%s7 + $0x168] sm:$0xff] %vm127, %v2990
  %3082 = vst.msk [vmem:[%s7 + $0x170] sm:$0xff] %vm127, %v2993
  %3083 = vst.msk [vmem:[%s7 + $0x178] sm:$0xff] %vm127, %v2995
  %3084 = vst.msk [vmem:[%s7 + $0x180] sm:$0xff] %vm127, %v2998
  %3085 = vst.msk [vmem:[%s7 + $0x188] sm:$0xff] %vm127, %v3000
  %3086 = vst.msk [vmem:[%s7 + $0x190] sm:$0xff] %vm127, %v3003
  %3087 = vst.msk [vmem:[%s7 + $0x198] sm:$0xff] %vm127, %v3005
  %3088 = vst.msk [vmem:[%s7 + $0x1a0] sm:$0xff] %vm127, %v3008
  %3089 = vst.msk [vmem:[%s7 + $0x1a8] sm:$0xff] %vm127, %v3010
  %3090 = vst.msk [vmem:[%s7 + $0x1b0] sm:$0xff] %vm127, %v3013
  %3091 = vst.msk [vmem:[%s7 + $0x1b8] sm:$0xff] %vm127, %v3015
  %3092 = vst.msk [vmem:[%s7 + $0x1c0] sm:$0xff] %vm127, %v3018
  %3093 = vst.msk [vmem:[%s7 + $0x1c8] sm:$0xff] %vm127, %v3020
  %3094 = vst.msk [vmem:[%s7 + $0x1d0] sm:$0xff] %vm127, %v3023
  %3095 = vst.msk [vmem:[%s7 + $0x1d8] sm:$0xff] %vm127, %v3025
  %3096 = vst.msk [vmem:[%s7 + $0x1e0] sm:$0xff] %vm127, %v3028
  %3097 = vst.msk [vmem:[%s7 + $0x1e8] sm:$0xff] %vm127, %v3030
  %3098 = vst.msk [vmem:[%s7 + $0x1f0] sm:$0xff] %vm127, %v3033
  // Predicated region
  $region30: #{tpu_custom_call.1} parent=0 // pred_check
    _
  $region31: #{tpu_custom_call.1} parent=0 // pred_check_branch
    %3100 = sbr.rel (0) target = $region33
  $region32: #{tpu_custom_call.1} parent=0 // pred_region
    _
  $region33: #{tpu_custom_call.1} parent=0 // pred_fallthru
    _
  // Predicated region
  $region34: #{tpu_custom_call.1} parent=0 // pred_check
    _
  $region35: #{tpu_custom_call.1} parent=0 // pred_check_branch
    %3102 = sbr.rel (0) target = $region37
  $region36: #{tpu_custom_call.1} parent=0 // pred_region
    _
  $region37: #{tpu_custom_call.1} parent=0 // pred_fallthru
    _

</llo_original>
